<compile_context>
chip_gen: v7x
topology: tpu7x:2x2x1
jax: 0.10.0
libtpu: 0.0.40
codegen_flags: <defaults>
</compile_context>

<pallas_src>
import functools
import math

import jax
import jax.numpy as jnp
from jax.experimental import pallas as pl
from jax.experimental.pallas import tpu as pltpu


# ----------------------------------------------------------------------------
# Kernel: B whole sequences (B*L rows) of a residual attention block per step.
# ----------------------------------------------------------------------------
def _block_kernel(x_ref, ln1w_ref, ln1b_ref, wqkv_ref, bqkv_ref, wo_ref, bo_ref,
                  ln2w_ref, ln2b_ref, wfc_ref, bfc_ref, wproj_ref, bproj_ref,
                  o_ref, *, n_head, seq_len, seqs_per_step):
    B, L = seqs_per_step, seq_len
    x = x_ref[...].astype(jnp.float32)                    # (B*L, D) f32
    M, D = x.shape
    dh = D // n_head

    def layer_norm(v, w, b):
        # LayerNorm always in fp32 (mirrors the fp16-safe subclass).
        mu = jnp.mean(v, axis=-1, keepdims=True)
        var = jnp.mean(jnp.square(v - mu), axis=-1, keepdims=True)
        return (v - mu) * jax.lax.rsqrt(var + 1e-5) * w + b

    # ----- attention branch: x + attn(ln_1(x)) -----
    h1 = layer_norm(x, ln1w_ref[...], ln1b_ref[...])                   # (M, D) f32
    # wqkv pre-transposed (D, 3D) bf16; softmax scale folded into q rows.
    qkv = jnp.dot(h1.astype(jnp.bfloat16), wqkv_ref[...],
                  preferred_element_type=jnp.float32) + bqkv_ref[...]  # (M, 3D) f32

    # Heads handled as values: static lane slices + leading-dim reshapes only
    # (no VMEM scratch, no concatenate, no transposes).  The head merge is
    # folded into the out-projection by accumulating per-head partials.
    attn = jnp.zeros((M, D), jnp.float32)
    for hh in range(n_head):
        c0 = hh * dh
        q_h = qkv[:, 0 * D + c0:0 * D + c0 + dh].reshape(B, L, dh).astype(jnp.bfloat16)
        k_h = qkv[:, 1 * D + c0:1 * D + c0 + dh].reshape(B, L, dh).astype(jnp.bfloat16)
        v_h = qkv[:, 2 * D + c0:2 * D + c0 + dh].reshape(B, L, dh).astype(jnp.bfloat16)

        s = jnp.einsum("bqd,bkd->bqk", q_h, k_h,
                       preferred_element_type=jnp.float32)             # (B, L, L) f32
        s = s - jnp.max(s, axis=-1, keepdims=True)
        p = jnp.exp(s)
        p = p * pl.reciprocal(jnp.sum(p, axis=-1, keepdims=True), approx=True)
        o_h = jnp.einsum("bqk,bkd->bqd", p.astype(jnp.bfloat16), v_h,
                         preferred_element_type=jnp.float32)           # (B, L, dh) f32

        # Out-projection partial for this head: (M, dh) @ (dh, D).
        attn = attn + jnp.dot(o_h.reshape(M, dh).astype(jnp.bfloat16),
                              wo_ref[c0:c0 + dh, :],
                              preferred_element_type=jnp.float32)
    attn = attn + bo_ref[...]
    x1 = x + attn                                                       # (M, D) f32

    # ----- MLP branch: x1 + c_proj(quick_gelu(c_fc(ln_2(x1)))) -----
    h2 = layer_norm(x1, ln2w_ref[...], ln2b_ref[...])                   # (M, D) f32
    fc = jnp.dot(h2.astype(jnp.bfloat16), wfc_ref[...],
                 preferred_element_type=jnp.float32) + bfc_ref[...]     # (M, 4D) f32
    gelu = fc * (1.0 / (1.0 + jnp.exp(-1.702 * fc)))                    # QuickGELU f32
    mlp = jnp.dot(gelu.astype(jnp.bfloat16), wproj_ref[...],
                  preferred_element_type=jnp.float32) + bproj_ref[...]  # (M, D) f32

    o_ref[...] = (x1 + mlp).astype(o_ref.dtype)


# ----------------------------------------------------------------------------
# Batch-major core wrapper: xb is (N, L, D)
# ----------------------------------------------------------------------------
def residual_attention_block_batch_major(xb, params, n_head, seqs_per_step=None):
    N, L, D = xb.shape
    dh = D // n_head
    scale = 1.0 / math.sqrt(dh)

    # --- one-time weight preparation (pre-transposed, bf16, scale folded) ---
    qscale = jnp.concatenate([jnp.full((D,), scale, jnp.float32),
                              jnp.ones((2 * D,), jnp.float32)])          # (3D,)
    wqkv_t = (params["wqkv"] * qscale[:, None]).T.astype(jnp.bfloat16)   # (D, 3D)
    bqkv = (params["bqkv"] * qscale[None, :]).astype(jnp.float32)        # (1, 3D)
    wo_t = params["wo"].T.astype(jnp.bfloat16)                           # (D, D)
    wfc_t = params["wfc"].T.astype(jnp.bfloat16)                         # (D, 4D)
    wproj_t = params["wproj"].T.astype(jnp.bfloat16)                     # (4D, D)

    weights = (
        params["ln1_w"], params["ln1_b"],
        wqkv_t, bqkv,
        wo_t, params["bo"],
        params["ln2_w"], params["ln2_b"],
        wfc_t, params["bfc"],
        wproj_t, params["bproj"],
    )

    # --- VMEM capacity (per generation) and per-step sequence count B ---
    try:
        vmem_cap = int(pltpu.get_tpu_info().vmem_capacity_bytes)
    except Exception:
        vmem_cap = 64 << 20                       # conservative fallback (v7x size)

    target_rows = 512 if vmem_cap >= (96 << 20) else 256   # 128 MiB parts vs v7x
    if seqs_per_step is None:
        B = max(1, min(N, -(-target_rows // L)))
    else:
        B = max(1, min(int(seqs_per_step), N))
    # Keep the row-block dim a multiple of 8 when the grid has more than one
    # step (Mosaic (8,128) block-shape constraint on the second-minor dim).
    step = 8 // math.gcd(L, 8)
    B = -(-B // step) * step
    n_steps = -(-N // B)
    N_pad = n_steps * B

    if N_pad != N:
        xb = jnp.concatenate(
            [xb, jnp.zeros((N_pad - N, L, D), xb.dtype)], axis=0)
    x2 = xb.reshape(N_pad * L, D)                                        # (N_pad*L, D)

    def full_spec(arr):
        # Full-array block with a constant block index (grid-invariant weight).
        nd = arr.ndim
        return pl.BlockSpec(arr.shape, lambda n, _nd=nd: (0,) * _nd)

    # --- VMEM budget: weights (double-buffered by default) + activations +
    #     f32 intermediates, capped at physical capacity minus headroom. ---
    M = B * L
    weight_bytes = sum(int(w.size) * w.dtype.itemsize for w in weights)
    act_bytes = 2 * 2 * M * D * 4                         # x in/out blocks, dbl-buffered
    interm_bytes = M * (3 * D + 2 * 4 * D + 6 * D) * 4    # qkv, fc, gelu + misc f32
    attn_tmp_bytes = 4 * B * L * L * 4                    # per-head scores/probs f32
    est = 2 * weight_bytes + act_bytes + interm_bytes + attn_tmp_bytes
    vmem_limit = int(min(max(est + est // 2 + (4 << 20), 24 << 20),
                         vmem_cap - (8 << 20)))

    kernel = functools.partial(_block_kernel, n_head=n_head,
                               seq_len=L, seqs_per_step=B)
    out2 = pl.pallas_call(
        kernel,
        out_shape=jax.ShapeDtypeStruct((N_pad * L, D), xb.dtype),
        grid=(n_steps,),
        in_specs=[pl.BlockSpec((M, D), lambda n: (n, 0))]
                 + [full_spec(w) for w in weights],
        out_specs=pl.BlockSpec((M, D), lambda n: (n, 0)),
        compiler_params=pltpu.CompilerParams(
            dimension_semantics=("parallel",),
            vmem_limit_bytes=vmem_limit),
    )(x2, *weights)

    out = out2.reshape(N_pad, L, D)
    return out[:N] if N_pad != N else out


# ----------------------------------------------------------------------------
# Public wrapper matching PyTorch's (L, N, D) convention
# ----------------------------------------------------------------------------
def residual_attention_block(x, params, n_head, seqs_per_step=None):
    """x: (L, N, D) float32 -> (L, N, D) float32."""
    xb = jnp.transpose(x, (1, 0, 2))                  # (N, L, D)
    out = residual_attention_block_batch_major(xb, params, n_head, seqs_per_step)
    return jnp.transpose(out, (1, 0, 2))              # back to (L, N, D)


# ----------------------------------------------------------------------------
# Deterministic parameter init (shapes mirror the PyTorch module's __init__)
# ----------------------------------------------------------------------------
def make_params(key, d_model):
    ks = jax.random.split(key, 12)
    s = 0.02
    return {
        # nn.MultiheadAttention: in_proj_weight (3D, D), in_proj_bias (3D,)
        "wqkv":  jax.random.normal(ks[0], (3 * d_model, d_model), jnp.float32) * s,
        "bqkv":  jax.random.normal(ks[1], (1, 3 * d_model), jnp.float32) * s,
        # out_proj: (D, D) + bias
        "wo":    jax.random.normal(ks[2], (d_model, d_model), jnp.float32) * s,
        "bo":    jax.random.normal(ks[3], (1, d_model), jnp.float32) * s,
        # LayerNorms
        "ln1_w": 1.0 + 0.1 * jax.random.normal(ks[4], (1, d_model), jnp.float32),
        "ln1_b": 0.1 * jax.random.normal(ks[5], (1, d_model), jnp.float32),
        "ln2_w": 1.0 + 0.1 * jax.random.normal(ks[6], (1, d_model), jnp.float32),
        "ln2_b": 0.1 * jax.random.normal(ks[7], (1, d_model), jnp.float32),
        # mlp.c_fc: (4D, D) + bias ; mlp.c_proj: (D, 4D) + bias
        "wfc":   jax.random.normal(ks[8], (4 * d_model, d_model), jnp.float32) * s,
        "bfc":   jax.random.normal(ks[9], (1, 4 * d_model), jnp.float32) * s,
        "wproj": jax.random.normal(ks[10], (d_model, 4 * d_model), jnp.float32) * s,
        "bproj": jax.random.normal(ks[11], (1, d_model), jnp.float32) * s,
    }


# ----------------------------------------------------------------------------
# Pure-JAX fp32 reference (mirrors PyTorch semantics) for verification
# ----------------------------------------------------------------------------
def reference(x, p, n_head):
    L, N, D = x.shape
    dh = D // n_head

    def ln(v, w, b):
        mu = v.mean(-1, keepdims=True)
        var = ((v - mu) ** 2).mean(-1, keepdims=True)
        return (v - mu) / jnp.sqrt(var + 1e-5) * w + b

    h = ln(x, p["ln1_w"][0], p["ln1_b"][0])
    qkv = h @ p["wqkv"].T + p["bqkv"][0]
    q, k, v = jnp.split(qkv, 3, axis=-1)

    def to_heads(t):                                        # (L,N,D)->(N,H,L,dh)
        return t.reshape(L, N, n_head, dh).transpose(1, 2, 0, 3)

    qh, kh, vh = to_heads(q), to_heads(k), to_heads(v)
    s = jnp.einsum("bhqd,bhkd->bhqk", qh, kh) / jnp.sqrt(dh)
    a = jax.nn.softmax(s, axis=-1)
    o = jnp.einsum("bhqk,bhkd->bhqd", a, vh)                # (N,H,L,dh)
    o = o.transpose(2, 0, 1, 3).reshape(L, N, D)
    attn_out = o @ p["wo"].T + p["bo"][0]
    x1 = x + attn_out

    h2 = ln(x1, p["ln2_w"][0], p["ln2_b"][0])
    fc = h2 @ p["wfc"].T + p["bfc"][0]
    g = fc * jax.nn.sigmoid(1.702 * fc)
    return x1 + g @ p["wproj"].T + p["bproj"][0]


if __name__ == "__main__":
    L, N, D, H = 8, 2, 32, 4   # seq=8, batch=2, d_model=32, n_head=4

    key = jax.random.PRNGKey(0)
    kx, kp = jax.random.split(key)
    x = jax.random.normal(kx, (L, N, D), jnp.float32)
    params = make_params(kp, D)

    out = residual_attention_block(x, params, H)
    out = jax.block_until_ready(out)

    ref = reference(x, params, H)
    assert out.shape == (L, N, D)
    # bf16 matmul operands (f32 accumulation) -> looser tolerance than pure f32.
    assert jnp.allclose(out, ref, atol=2e-2, rtol=2e-2), \
        f"max abs err {jnp.max(jnp.abs(out - ref))}"

    print("KERNEL_OK")
</pallas_src>

<mosaic_0001>
module attributes {stable_mosaic.version = 11 : i64} {
  func.func @_block_kernel(%arg0: i32, %arg1: memref<16x32xf32, #tpu.memory_space<vmem>>, %arg2: memref<1x32xf32, #tpu.memory_space<vmem>>, %arg3: memref<1x32xf32, #tpu.memory_space<vmem>>, %arg4: memref<32x96xbf16, #tpu.memory_space<vmem>>, %arg5: memref<1x96xf32, #tpu.memory_space<vmem>>, %arg6: memref<32x32xbf16, #tpu.memory_space<vmem>>, %arg7: memref<1x32xf32, #tpu.memory_space<vmem>>, %arg8: memref<1x32xf32, #tpu.memory_space<vmem>>, %arg9: memref<1x32xf32, #tpu.memory_space<vmem>>, %arg10: memref<32x128xbf16, #tpu.memory_space<vmem>>, %arg11: memref<1x128xf32, #tpu.memory_space<vmem>>, %arg12: memref<128x32xbf16, #tpu.memory_space<vmem>>, %arg13: memref<1x32xf32, #tpu.memory_space<vmem>>, %arg14: memref<16x32xf32, #tpu.memory_space<vmem>>) attributes {dimension_semantics = [#tpu.dimension_semantics<parallel>], iteration_bounds = array<i64: 1>, scalar_prefetch = 0 : i64, scratch_operands = 0 : i64, tpu.core_type = #tpu.core_type<tc>, window_params = [{transform_indices = @transform_0, window_bounds = array<i64: 16, 32>}, {pipeline_mode = #tpu.pipeline_mode<synchronous>, transform_indices = @transform_1, window_bounds = array<i64: 1, 32>}, {pipeline_mode = #tpu.pipeline_mode<synchronous>, transform_indices = @transform_2, window_bounds = array<i64: 1, 32>}, {pipeline_mode = #tpu.pipeline_mode<synchronous>, transform_indices = @transform_3, window_bounds = array<i64: 32, 96>}, {pipeline_mode = #tpu.pipeline_mode<synchronous>, transform_indices = @transform_4, window_bounds = array<i64: 1, 96>}, {pipeline_mode = #tpu.pipeline_mode<synchronous>, transform_indices = @transform_5, window_bounds = array<i64: 32, 32>}, {pipeline_mode = #tpu.pipeline_mode<synchronous>, transform_indices = @transform_6, window_bounds = array<i64: 1, 32>}, {pipeline_mode = #tpu.pipeline_mode<synchronous>, transform_indices = @transform_7, window_bounds = array<i64: 1, 32>}, {pipeline_mode = #tpu.pipeline_mode<synchronous>, transform_indices = @transform_8, window_bounds = array<i64: 1, 32>}, {pipeline_mode = #tpu.pipeline_mode<synchronous>, transform_indices = @transform_9, window_bounds = array<i64: 32, 128>}, {pipeline_mode = #tpu.pipeline_mode<synchronous>, transform_indices = @transform_10, window_bounds = array<i64: 1, 128>}, {pipeline_mode = #tpu.pipeline_mode<synchronous>, transform_indices = @transform_11, window_bounds = array<i64: 128, 32>}, {pipeline_mode = #tpu.pipeline_mode<synchronous>, transform_indices = @transform_12, window_bounds = array<i64: 1, 32>}, {transform_indices = @transform_13, window_bounds = array<i64: 16, 32>}]} {
    %c0 = arith.constant 0 : index
    %c0_0 = arith.constant 0 : index
    %0 = vector.load %arg1[%c0, %c0_0] : memref<16x32xf32, #tpu.memory_space<vmem>>, vector<16x32xf32>
    %c0_1 = arith.constant 0 : index
    %c0_2 = arith.constant 0 : index
    %1 = vector.load %arg2[%c0_1, %c0_2] : memref<1x32xf32, #tpu.memory_space<vmem>>, vector<1x32xf32>
    %c0_3 = arith.constant 0 : index
    %c0_4 = arith.constant 0 : index
    %2 = vector.load %arg3[%c0_3, %c0_4] : memref<1x32xf32, #tpu.memory_space<vmem>>, vector<1x32xf32>
    %cst = arith.constant dense<0.000000e+00> : vector<16xf32>
    %3 = vector.multi_reduction <add>, %0, %cst [1] : vector<16x32xf32> to vector<16xf32>
    %4 = vector.shape_cast %3 : vector<16xf32> to vector<16x1xf32>
    %cst_5 = arith.constant 3.200000e+01 : f32
    %5 = vector.broadcast %cst_5 : f32 to vector<16x1xf32>
    %6 = arith.divf %4, %5 : vector<16x1xf32>
    %7 = vector.broadcast %6 : vector<16x1xf32> to vector<16x32xf32>
    %8 = arith.subf %0, %7 : vector<16x32xf32>
    %9 = arith.mulf %8, %8 : vector<16x32xf32>
    %cst_6 = arith.constant dense<0.000000e+00> : vector<16xf32>
    %10 = vector.multi_reduction <add>, %9, %cst_6 [1] : vector<16x32xf32> to vector<16xf32>
    %11 = vector.shape_cast %10 : vector<16xf32> to vector<16x1xf32>
    %cst_7 = arith.constant 3.200000e+01 : f32
    %12 = vector.broadcast %cst_7 : f32 to vector<16x1xf32>
    %13 = arith.divf %11, %12 : vector<16x1xf32>
    %14 = vector.broadcast %6 : vector<16x1xf32> to vector<16x32xf32>
    %15 = arith.subf %0, %14 : vector<16x32xf32>
    %cst_8 = arith.constant 9.99999974E-6 : f32
    %16 = vector.broadcast %cst_8 : f32 to vector<16x1xf32>
    %17 = arith.addf %13, %16 : vector<16x1xf32>
    %18 = math.rsqrt %17 : vector<16x1xf32>
    %19 = vector.broadcast %18 : vector<16x1xf32> to vector<16x32xf32>
    %20 = arith.mulf %15, %19 : vector<16x32xf32>
    %21 = vector.broadcast %1 : vector<1x32xf32> to vector<16x32xf32>
    %22 = arith.mulf %20, %21 : vector<16x32xf32>
    %23 = vector.broadcast %2 : vector<1x32xf32> to vector<16x32xf32>
    %24 = arith.addf %22, %23 : vector<16x32xf32>
    %25 = arith.truncf %24 : vector<16x32xf32> to vector<16x32xbf16>
    %c0_9 = arith.constant 0 : index
    %c0_10 = arith.constant 0 : index
    %26 = vector.load %arg4[%c0_9, %c0_10] : memref<32x96xbf16, #tpu.memory_space<vmem>>, vector<32x96xbf16>
    %cst_11 = arith.constant dense<0.000000e+00> : vector<16x96xf32>
    %27 = tpu.matmul %25, %26, %cst_11 {dimension_numbers = #tpu.dot_dimension_numbers<[1], [0], [0], [1], [0, 0, 1, 1], [], []>} : vector<16x32xbf16>, vector<32x96xbf16>, vector<16x96xf32> -> vector<16x96xf32>
    %c0_12 = arith.constant 0 : index
    %c0_13 = arith.constant 0 : index
    %28 = vector.load %arg5[%c0_12, %c0_13] : memref<1x96xf32, #tpu.memory_space<vmem>>, vector<1x96xf32>
    %29 = vector.broadcast %28 : vector<1x96xf32> to vector<16x96xf32>
    %30 = arith.addf %27, %29 : vector<16x96xf32>
    %cst_14 = arith.constant 0.000000e+00 : f32
    %31 = vector.broadcast %cst_14 : f32 to vector<16x32xf32>
    %32 = vector.extract_strided_slice %30 {offsets = [0, 0], sizes = [16, 8], strides = [1, 1]} : vector<16x96xf32> to vector<16x8xf32>
    %33 = vector.shape_cast %32 : vector<16x8xf32> to vector<2x8x8xf32>
    %34 = arith.truncf %33 : vector<2x8x8xf32> to vector<2x8x8xbf16>
    %35 = vector.extract_strided_slice %30 {offsets = [0, 32], sizes = [16, 8], strides = [1, 1]} : vector<16x96xf32> to vector<16x8xf32>
    %36 = vector.shape_cast %35 : vector<16x8xf32> to vector<2x8x8xf32>
    %37 = arith.truncf %36 : vector<2x8x8xf32> to vector<2x8x8xbf16>
    %38 = vector.extract_strided_slice %30 {offsets = [0, 64], sizes = [16, 8], strides = [1, 1]} : vector<16x96xf32> to vector<16x8xf32>
    %39 = vector.shape_cast %38 : vector<16x8xf32> to vector<2x8x8xf32>
    %40 = arith.truncf %39 : vector<2x8x8xf32> to vector<2x8x8xbf16>
    "tpu.trace_start"() <{level = 10 : i32, message = "bqd,bkd->bqk"}> : () -> ()
    %cst_15 = arith.constant dense<0.000000e+00> : vector<2x8x8xf32>
    %41 = tpu.matmul %34, %37, %cst_15 {dimension_numbers = #tpu.dot_dimension_numbers<[2], [2], [1], [1], [0, 0, 0, 1, 1, 1], [0], [0]>} : vector<2x8x8xbf16>, vector<2x8x8xbf16>, vector<2x8x8xf32> -> vector<2x8x8xf32>
    "tpu.trace_stop"() : () -> ()
    %cst_16 = arith.constant dense<0xFF800000> : vector<2x8xf32>
    %42 = vector.multi_reduction <maximumf>, %41, %cst_16 [2] : vector<2x8x8xf32> to vector<2x8xf32>
    %43 = vector.shape_cast %42 : vector<2x8xf32> to vector<2x8x1xf32>
    %44 = vector.broadcast %43 : vector<2x8x1xf32> to vector<2x8x8xf32>
    %45 = arith.subf %41, %44 : vector<2x8x8xf32>
    %46 = math.exp %45 : vector<2x8x8xf32>
    %cst_17 = arith.constant dense<0.000000e+00> : vector<2x8xf32>
    %47 = vector.multi_reduction <add>, %46, %cst_17 [2] : vector<2x8x8xf32> to vector<2x8xf32>
    %48 = vector.shape_cast %47 : vector<2x8xf32> to vector<2x8x1xf32>
    %49 = tpu.reciprocal %48 {approx = true} : vector<2x8x1xf32> -> vector<2x8x1xf32>
    %50 = vector.broadcast %49 : vector<2x8x1xf32> to vector<2x8x8xf32>
    %51 = arith.mulf %46, %50 : vector<2x8x8xf32>
    %52 = arith.truncf %51 : vector<2x8x8xf32> to vector<2x8x8xbf16>
    "tpu.trace_start"() <{level = 10 : i32, message = "bqk,bkd->bqd"}> : () -> ()
    %cst_18 = arith.constant dense<0.000000e+00> : vector<2x8x8xf32>
    %53 = tpu.matmul %52, %40, %cst_18 {dimension_numbers = #tpu.dot_dimension_numbers<[2], [1], [1], [2], [0, 0, 0, 1, 1, 2], [0], [0]>} : vector<2x8x8xbf16>, vector<2x8x8xbf16>, vector<2x8x8xf32> -> vector<2x8x8xf32>
    "tpu.trace_stop"() : () -> ()
    %54 = vector.shape_cast %53 : vector<2x8x8xf32> to vector<16x8xf32>
    %55 = arith.truncf %54 : vector<16x8xf32> to vector<16x8xbf16>
    %c0_19 = arith.constant 0 : index
    %c0_20 = arith.constant 0 : index
    %56 = vector.load %arg6[%c0_19, %c0_20] : memref<32x32xbf16, #tpu.memory_space<vmem>>, vector<8x32xbf16>
    %cst_21 = arith.constant dense<0.000000e+00> : vector<16x32xf32>
    %57 = tpu.matmul %55, %56, %cst_21 {dimension_numbers = #tpu.dot_dimension_numbers<[1], [0], [0], [1], [0, 0, 1, 1], [], []>} : vector<16x8xbf16>, vector<8x32xbf16>, vector<16x32xf32> -> vector<16x32xf32>
    %58 = arith.addf %31, %57 : vector<16x32xf32>
    %59 = vector.extract_strided_slice %30 {offsets = [0, 8], sizes = [16, 8], strides = [1, 1]} : vector<16x96xf32> to vector<16x8xf32>
    %60 = vector.shape_cast %59 : vector<16x8xf32> to vector<2x8x8xf32>
    %61 = arith.truncf %60 : vector<2x8x8xf32> to vector<2x8x8xbf16>
    %62 = vector.extract_strided_slice %30 {offsets = [0, 40], sizes = [16, 8], strides = [1, 1]} : vector<16x96xf32> to vector<16x8xf32>
    %63 = vector.shape_cast %62 : vector<16x8xf32> to vector<2x8x8xf32>
    %64 = arith.truncf %63 : vector<2x8x8xf32> to vector<2x8x8xbf16>
    %65 = vector.extract_strided_slice %30 {offsets = [0, 72], sizes = [16, 8], strides = [1, 1]} : vector<16x96xf32> to vector<16x8xf32>
    %66 = vector.shape_cast %65 : vector<16x8xf32> to vector<2x8x8xf32>
    %67 = arith.truncf %66 : vector<2x8x8xf32> to vector<2x8x8xbf16>
    "tpu.trace_start"() <{level = 10 : i32, message = "bqd,bkd->bqk"}> : () -> ()
    %cst_22 = arith.constant dense<0.000000e+00> : vector<2x8x8xf32>
    %68 = tpu.matmul %61, %64, %cst_22 {dimension_numbers = #tpu.dot_dimension_numbers<[2], [2], [1], [1], [0, 0, 0, 1, 1, 1], [0], [0]>} : vector<2x8x8xbf16>, vector<2x8x8xbf16>, vector<2x8x8xf32> -> vector<2x8x8xf32>
    "tpu.trace_stop"() : () -> ()
    %cst_23 = arith.constant dense<0xFF800000> : vector<2x8xf32>
    %69 = vector.multi_reduction <maximumf>, %68, %cst_23 [2] : vector<2x8x8xf32> to vector<2x8xf32>
    %70 = vector.shape_cast %69 : vector<2x8xf32> to vector<2x8x1xf32>
    %71 = vector.broadcast %70 : vector<2x8x1xf32> to vector<2x8x8xf32>
    %72 = arith.subf %68, %71 : vector<2x8x8xf32>
    %73 = math.exp %72 : vector<2x8x8xf32>
    %cst_24 = arith.constant dense<0.000000e+00> : vector<2x8xf32>
    %74 = vector.multi_reduction <add>, %73, %cst_24 [2] : vector<2x8x8xf32> to vector<2x8xf32>
    %75 = vector.shape_cast %74 : vector<2x8xf32> to vector<2x8x1xf32>
    %76 = tpu.reciprocal %75 {approx = true} : vector<2x8x1xf32> -> vector<2x8x1xf32>
    %77 = vector.broadcast %76 : vector<2x8x1xf32> to vector<2x8x8xf32>
    %78 = arith.mulf %73, %77 : vector<2x8x8xf32>
    %79 = arith.truncf %78 : vector<2x8x8xf32> to vector<2x8x8xbf16>
    "tpu.trace_start"() <{level = 10 : i32, message = "bqk,bkd->bqd"}> : () -> ()
    %cst_25 = arith.constant dense<0.000000e+00> : vector<2x8x8xf32>
    %80 = tpu.matmul %79, %67, %cst_25 {dimension_numbers = #tpu.dot_dimension_numbers<[2], [1], [1], [2], [0, 0, 0, 1, 1, 2], [0], [0]>} : vector<2x8x8xbf16>, vector<2x8x8xbf16>, vector<2x8x8xf32> -> vector<2x8x8xf32>
    "tpu.trace_stop"() : () -> ()
    %81 = vector.shape_cast %80 : vector<2x8x8xf32> to vector<16x8xf32>
    %82 = arith.truncf %81 : vector<16x8xf32> to vector<16x8xbf16>
    %c8 = arith.constant 8 : index
    %c0_26 = arith.constant 0 : index
    %83 = vector.load %arg6[%c8, %c0_26] : memref<32x32xbf16, #tpu.memory_space<vmem>>, vector<8x32xbf16>
    %cst_27 = arith.constant dense<0.000000e+00> : vector<16x32xf32>
    %84 = tpu.matmul %82, %83, %cst_27 {dimension_numbers = #tpu.dot_dimension_numbers<[1], [0], [0], [1], [0, 0, 1, 1], [], []>} : vector<16x8xbf16>, vector<8x32xbf16>, vector<16x32xf32> -> vector<16x32xf32>
    %85 = arith.addf %58, %84 : vector<16x32xf32>
    %86 = vector.extract_strided_slice %30 {offsets = [0, 16], sizes = [16, 8], strides = [1, 1]} : vector<16x96xf32> to vector<16x8xf32>
    %87 = vector.shape_cast %86 : vector<16x8xf32> to vector<2x8x8xf32>
    %88 = arith.truncf %87 : vector<2x8x8xf32> to vector<2x8x8xbf16>
    %89 = vector.extract_strided_slice %30 {offsets = [0, 48], sizes = [16, 8], strides = [1, 1]} : vector<16x96xf32> to vector<16x8xf32>
    %90 = vector.shape_cast %89 : vector<16x8xf32> to vector<2x8x8xf32>
    %91 = arith.truncf %90 : vector<2x8x8xf32> to vector<2x8x8xbf16>
    %92 = vector.extract_strided_slice %30 {offsets = [0, 80], sizes = [16, 8], strides = [1, 1]} : vector<16x96xf32> to vector<16x8xf32>
    %93 = vector.shape_cast %92 : vector<16x8xf32> to vector<2x8x8xf32>
    %94 = arith.truncf %93 : vector<2x8x8xf32> to vector<2x8x8xbf16>
    "tpu.trace_start"() <{level = 10 : i32, message = "bqd,bkd->bqk"}> : () -> ()
    %cst_28 = arith.constant dense<0.000000e+00> : vector<2x8x8xf32>
    %95 = tpu.matmul %88, %91, %cst_28 {dimension_numbers = #tpu.dot_dimension_numbers<[2], [2], [1], [1], [0, 0, 0, 1, 1, 1], [0], [0]>} : vector<2x8x8xbf16>, vector<2x8x8xbf16>, vector<2x8x8xf32> -> vector<2x8x8xf32>
    "tpu.trace_stop"() : () -> ()
    %cst_29 = arith.constant dense<0xFF800000> : vector<2x8xf32>
    %96 = vector.multi_reduction <maximumf>, %95, %cst_29 [2] : vector<2x8x8xf32> to vector<2x8xf32>
    %97 = vector.shape_cast %96 : vector<2x8xf32> to vector<2x8x1xf32>
    %98 = vector.broadcast %97 : vector<2x8x1xf32> to vector<2x8x8xf32>
    %99 = arith.subf %95, %98 : vector<2x8x8xf32>
    %100 = math.exp %99 : vector<2x8x8xf32>
    %cst_30 = arith.constant dense<0.000000e+00> : vector<2x8xf32>
    %101 = vector.multi_reduction <add>, %100, %cst_30 [2] : vector<2x8x8xf32> to vector<2x8xf32>
    %102 = vector.shape_cast %101 : vector<2x8xf32> to vector<2x8x1xf32>
    %103 = tpu.reciprocal %102 {approx = true} : vector<2x8x1xf32> -> vector<2x8x1xf32>
    %104 = vector.broadcast %103 : vector<2x8x1xf32> to vector<2x8x8xf32>
    %105 = arith.mulf %100, %104 : vector<2x8x8xf32>
    %106 = arith.truncf %105 : vector<2x8x8xf32> to vector<2x8x8xbf16>
    "tpu.trace_start"() <{level = 10 : i32, message = "bqk,bkd->bqd"}> : () -> ()
    %cst_31 = arith.constant dense<0.000000e+00> : vector<2x8x8xf32>
    %107 = tpu.matmul %106, %94, %cst_31 {dimension_numbers = #tpu.dot_dimension_numbers<[2], [1], [1], [2], [0, 0, 0, 1, 1, 2], [0], [0]>} : vector<2x8x8xbf16>, vector<2x8x8xbf16>, vector<2x8x8xf32> -> vector<2x8x8xf32>
    "tpu.trace_stop"() : () -> ()
    %108 = vector.shape_cast %107 : vector<2x8x8xf32> to vector<16x8xf32>
    %109 = arith.truncf %108 : vector<16x8xf32> to vector<16x8xbf16>
    %c16 = arith.constant 16 : index
    %c0_32 = arith.constant 0 : index
    %110 = vector.load %arg6[%c16, %c0_32] : memref<32x32xbf16, #tpu.memory_space<vmem>>, vector<8x32xbf16>
    %cst_33 = arith.constant dense<0.000000e+00> : vector<16x32xf32>
    %111 = tpu.matmul %109, %110, %cst_33 {dimension_numbers = #tpu.dot_dimension_numbers<[1], [0], [0], [1], [0, 0, 1, 1], [], []>} : vector<16x8xbf16>, vector<8x32xbf16>, vector<16x32xf32> -> vector<16x32xf32>
    %112 = arith.addf %85, %111 : vector<16x32xf32>
    %113 = vector.extract_strided_slice %30 {offsets = [0, 24], sizes = [16, 8], strides = [1, 1]} : vector<16x96xf32> to vector<16x8xf32>
    %114 = vector.shape_cast %113 : vector<16x8xf32> to vector<2x8x8xf32>
    %115 = arith.truncf %114 : vector<2x8x8xf32> to vector<2x8x8xbf16>
    %116 = vector.extract_strided_slice %30 {offsets = [0, 56], sizes = [16, 8], strides = [1, 1]} : vector<16x96xf32> to vector<16x8xf32>
    %117 = vector.shape_cast %116 : vector<16x8xf32> to vector<2x8x8xf32>
    %118 = arith.truncf %117 : vector<2x8x8xf32> to vector<2x8x8xbf16>
    %119 = vector.extract_strided_slice %30 {offsets = [0, 88], sizes = [16, 8], strides = [1, 1]} : vector<16x96xf32> to vector<16x8xf32>
    %120 = vector.shape_cast %119 : vector<16x8xf32> to vector<2x8x8xf32>
    %121 = arith.truncf %120 : vector<2x8x8xf32> to vector<2x8x8xbf16>
    "tpu.trace_start"() <{level = 10 : i32, message = "bqd,bkd->bqk"}> : () -> ()
    %cst_34 = arith.constant dense<0.000000e+00> : vector<2x8x8xf32>
    %122 = tpu.matmul %115, %118, %cst_34 {dimension_numbers = #tpu.dot_dimension_numbers<[2], [2], [1], [1], [0, 0, 0, 1, 1, 1], [0], [0]>} : vector<2x8x8xbf16>, vector<2x8x8xbf16>, vector<2x8x8xf32> -> vector<2x8x8xf32>
    "tpu.trace_stop"() : () -> ()
    %cst_35 = arith.constant dense<0xFF800000> : vector<2x8xf32>
    %123 = vector.multi_reduction <maximumf>, %122, %cst_35 [2] : vector<2x8x8xf32> to vector<2x8xf32>
    %124 = vector.shape_cast %123 : vector<2x8xf32> to vector<2x8x1xf32>
    %125 = vector.broadcast %124 : vector<2x8x1xf32> to vector<2x8x8xf32>
    %126 = arith.subf %122, %125 : vector<2x8x8xf32>
    %127 = math.exp %126 : vector<2x8x8xf32>
    %cst_36 = arith.constant dense<0.000000e+00> : vector<2x8xf32>
    %128 = vector.multi_reduction <add>, %127, %cst_36 [2] : vector<2x8x8xf32> to vector<2x8xf32>
    %129 = vector.shape_cast %128 : vector<2x8xf32> to vector<2x8x1xf32>
    %130 = tpu.reciprocal %129 {approx = true} : vector<2x8x1xf32> -> vector<2x8x1xf32>
    %131 = vector.broadcast %130 : vector<2x8x1xf32> to vector<2x8x8xf32>
    %132 = arith.mulf %127, %131 : vector<2x8x8xf32>
    %133 = arith.truncf %132 : vector<2x8x8xf32> to vector<2x8x8xbf16>
    "tpu.trace_start"() <{level = 10 : i32, message = "bqk,bkd->bqd"}> : () -> ()
    %cst_37 = arith.constant dense<0.000000e+00> : vector<2x8x8xf32>
    %134 = tpu.matmul %133, %121, %cst_37 {dimension_numbers = #tpu.dot_dimension_numbers<[2], [1], [1], [2], [0, 0, 0, 1, 1, 2], [0], [0]>} : vector<2x8x8xbf16>, vector<2x8x8xbf16>, vector<2x8x8xf32> -> vector<2x8x8xf32>
    "tpu.trace_stop"() : () -> ()
    %135 = vector.shape_cast %134 : vector<2x8x8xf32> to vector<16x8xf32>
    %136 = arith.truncf %135 : vector<16x8xf32> to vector<16x8xbf16>
    %c24 = arith.constant 24 : index
    %c0_38 = arith.constant 0 : index
    %137 = vector.load %arg6[%c24, %c0_38] : memref<32x32xbf16, #tpu.memory_space<vmem>>, vector<8x32xbf16>
    %cst_39 = arith.constant dense<0.000000e+00> : vector<16x32xf32>
    %138 = tpu.matmul %136, %137, %cst_39 {dimension_numbers = #tpu.dot_dimension_numbers<[1], [0], [0], [1], [0, 0, 1, 1], [], []>} : vector<16x8xbf16>, vector<8x32xbf16>, vector<16x32xf32> -> vector<16x32xf32>
    %139 = arith.addf %112, %138 : vector<16x32xf32>
    %c0_40 = arith.constant 0 : index
    %c0_41 = arith.constant 0 : index
    %140 = vector.load %arg7[%c0_40, %c0_41] : memref<1x32xf32, #tpu.memory_space<vmem>>, vector<1x32xf32>
    %141 = vector.broadcast %140 : vector<1x32xf32> to vector<16x32xf32>
    %142 = arith.addf %139, %141 : vector<16x32xf32>
    %143 = arith.addf %0, %142 : vector<16x32xf32>
    %c0_42 = arith.constant 0 : index
    %c0_43 = arith.constant 0 : index
    %144 = vector.load %arg8[%c0_42, %c0_43] : memref<1x32xf32, #tpu.memory_space<vmem>>, vector<1x32xf32>
    %c0_44 = arith.constant 0 : index
    %c0_45 = arith.constant 0 : index
    %145 = vector.load %arg9[%c0_44, %c0_45] : memref<1x32xf32, #tpu.memory_space<vmem>>, vector<1x32xf32>
    %cst_46 = arith.constant dense<0.000000e+00> : vector<16xf32>
    %146 = vector.multi_reduction <add>, %143, %cst_46 [1] : vector<16x32xf32> to vector<16xf32>
    %147 = vector.shape_cast %146 : vector<16xf32> to vector<16x1xf32>
    %cst_47 = arith.constant 3.200000e+01 : f32
    %148 = vector.broadcast %cst_47 : f32 to vector<16x1xf32>
    %149 = arith.divf %147, %148 : vector<16x1xf32>
    %150 = vector.broadcast %149 : vector<16x1xf32> to vector<16x32xf32>
    %151 = arith.subf %143, %150 : vector<16x32xf32>
    %152 = arith.mulf %151, %151 : vector<16x32xf32>
    %cst_48 = arith.constant dense<0.000000e+00> : vector<16xf32>
    %153 = vector.multi_reduction <add>, %152, %cst_48 [1] : vector<16x32xf32> to vector<16xf32>
    %154 = vector.shape_cast %153 : vector<16xf32> to vector<16x1xf32>
    %cst_49 = arith.constant 3.200000e+01 : f32
    %155 = vector.broadcast %cst_49 : f32 to vector<16x1xf32>
    %156 = arith.divf %154, %155 : vector<16x1xf32>
    %157 = vector.broadcast %149 : vector<16x1xf32> to vector<16x32xf32>
    %158 = arith.subf %143, %157 : vector<16x32xf32>
    %cst_50 = arith.constant 9.99999974E-6 : f32
    %159 = vector.broadcast %cst_50 : f32 to vector<16x1xf32>
    %160 = arith.addf %156, %159 : vector<16x1xf32>
    %161 = math.rsqrt %160 : vector<16x1xf32>
    %162 = vector.broadcast %161 : vector<16x1xf32> to vector<16x32xf32>
    %163 = arith.mulf %158, %162 : vector<16x32xf32>
    %164 = vector.broadcast %144 : vector<1x32xf32> to vector<16x32xf32>
    %165 = arith.mulf %163, %164 : vector<16x32xf32>
    %166 = vector.broadcast %145 : vector<1x32xf32> to vector<16x32xf32>
    %167 = arith.addf %165, %166 : vector<16x32xf32>
    %168 = arith.truncf %167 : vector<16x32xf32> to vector<16x32xbf16>
    %c0_51 = arith.constant 0 : index
    %c0_52 = arith.constant 0 : index
    %169 = vector.load %arg10[%c0_51, %c0_52] : memref<32x128xbf16, #tpu.memory_space<vmem>>, vector<32x128xbf16>
    %cst_53 = arith.constant dense<0.000000e+00> : vector<16x128xf32>
    %170 = tpu.matmul %168, %169, %cst_53 {dimension_numbers = #tpu.dot_dimension_numbers<[1], [0], [0], [1], [0, 0, 1, 1], [], []>} : vector<16x32xbf16>, vector<32x128xbf16>, vector<16x128xf32> -> vector<16x128xf32>
    %c0_54 = arith.constant 0 : index
    %c0_55 = arith.constant 0 : index
    %171 = vector.load %arg11[%c0_54, %c0_55] : memref<1x128xf32, #tpu.memory_space<vmem>>, vector<1x128xf32>
    %172 = vector.broadcast %171 : vector<1x128xf32> to vector<16x128xf32>
    %173 = arith.addf %170, %172 : vector<16x128xf32>
    %cst_56 = arith.constant -1.702000e+00 : f32
    %174 = vector.broadcast %cst_56 : f32 to vector<16x128xf32>
    %175 = arith.mulf %174, %173 : vector<16x128xf32>
    %176 = math.exp %175 : vector<16x128xf32>
    %cst_57 = arith.constant 1.000000e+00 : f32
    %177 = vector.broadcast %cst_57 : f32 to vector<16x128xf32>
    %178 = arith.addf %177, %176 : vector<16x128xf32>
    %cst_58 = arith.constant 1.000000e+00 : f32
    %179 = vector.broadcast %cst_58 : f32 to vector<16x128xf32>
    %180 = arith.divf %179, %178 : vector<16x128xf32>
    %181 = arith.mulf %173, %180 : vector<16x128xf32>
    %182 = arith.truncf %181 : vector<16x128xf32> to vector<16x128xbf16>
    %c0_59 = arith.constant 0 : index
    %c0_60 = arith.constant 0 : index
    %183 = vector.load %arg12[%c0_59, %c0_60] : memref<128x32xbf16, #tpu.memory_space<vmem>>, vector<128x32xbf16>
    %cst_61 = arith.constant dense<0.000000e+00> : vector<16x32xf32>
    %184 = tpu.matmul %182, %183, %cst_61 {dimension_numbers = #tpu.dot_dimension_numbers<[1], [0], [0], [1], [0, 0, 1, 1], [], []>} : vector<16x128xbf16>, vector<128x32xbf16>, vector<16x32xf32> -> vector<16x32xf32>
    %c0_62 = arith.constant 0 : index
    %c0_63 = arith.constant 0 : index
    %185 = vector.load %arg13[%c0_62, %c0_63] : memref<1x32xf32, #tpu.memory_space<vmem>>, vector<1x32xf32>
    %186 = vector.broadcast %185 : vector<1x32xf32> to vector<16x32xf32>
    %187 = arith.addf %184, %186 : vector<16x32xf32>
    %188 = arith.addf %143, %187 : vector<16x32xf32>
    %c0_64 = arith.constant 0 : index
    %c0_65 = arith.constant 0 : index
    %189 = vector.load %arg14[%c0_64, %c0_65] : memref<16x32xf32, #tpu.memory_space<vmem>>, vector<16x32xf32>
    tpu.vector_store %arg14[%c0_64, %c0_65], %188 {strides = array<i32>} : memref<16x32xf32, #tpu.memory_space<vmem>>, vector<16x32xf32>,
    return
  }
  func.func @transform_0(%arg0: i32) -> (i32, i32) {
    %c0_i32 = arith.constant 0 : i32
    %c0_i32_0 = arith.constant 0 : i32
    return %arg0, %c0_i32 : i32, i32
  }
  func.func @transform_1(%arg0: i32) -> (i32, i32) {
    %c0_i32 = arith.constant 0 : i32
    %c0_i32_0 = arith.constant 0 : i32
    %c0_i32_1 = arith.constant 0 : i32
    return %c0_i32, %c0_i32_0 : i32, i32
  }
  func.func @transform_2(%arg0: i32) -> (i32, i32) {
    %c0_i32 = arith.constant 0 : i32
    %c0_i32_0 = arith.constant 0 : i32
    %c0_i32_1 = arith.constant 0 : i32
    return %c0_i32, %c0_i32_0 : i32, i32
  }
  func.func @transform_3(%arg0: i32) -> (i32, i32) {
    %c0_i32 = arith.constant 0 : i32
    %c0_i32_0 = arith.constant 0 : i32
    %c0_i32_1 = arith.constant 0 : i32
    return %c0_i32, %c0_i32_0 : i32, i32
  }
  func.func @transform_4(%arg0: i32) -> (i32, i32) {
    %c0_i32 = arith.constant 0 : i32
    %c0_i32_0 = arith.constant 0 : i32
    %c0_i32_1 = arith.constant 0 : i32
    return %c0_i32, %c0_i32_0 : i32, i32
  }
  func.func @transform_5(%arg0: i32) -> (i32, i32) {
    %c0_i32 = arith.constant 0 : i32
    %c0_i32_0 = arith.constant 0 : i32
    %c0_i32_1 = arith.constant 0 : i32
    return %c0_i32, %c0_i32_0 : i32, i32
  }
  func.func @transform_6(%arg0: i32) -> (i32, i32) {
    %c0_i32 = arith.constant 0 : i32
    %c0_i32_0 = arith.constant 0 : i32
    %c0_i32_1 = arith.constant 0 : i32
    return %c0_i32, %c0_i32_0 : i32, i32
  }
  func.func @transform_7(%arg0: i32) -> (i32, i32) {
    %c0_i32 = arith.constant 0 : i32
    %c0_i32_0 = arith.constant 0 : i32
    %c0_i32_1 = arith.constant 0 : i32
    return %c0_i32, %c0_i32_0 : i32, i32
  }
  func.func @transform_8(%arg0: i32) -> (i32, i32) {
    %c0_i32 = arith.constant 0 : i32
    %c0_i32_0 = arith.constant 0 : i32
    %c0_i32_1 = arith.constant 0 : i32
    return %c0_i32, %c0_i32_0 : i32, i32
  }
  func.func @transform_9(%arg0: i32) -> (i32, i32) {
    %c0_i32 = arith.constant 0 : i32
    %c0_i32_0 = arith.constant 0 : i32
    %c0_i32_1 = arith.constant 0 : i32
    return %c0_i32, %c0_i32_0 : i32, i32
  }
  func.func @transform_10(%arg0: i32) -> (i32, i32) {
    %c0_i32 = arith.constant 0 : i32
    %c0_i32_0 = arith.constant 0 : i32
    %c0_i32_1 = arith.constant 0 : i32
    return %c0_i32, %c0_i32_0 : i32, i32
  }
  func.func @transform_11(%arg0: i32) -> (i32, i32) {
    %c0_i32 = arith.constant 0 : i32
    %c0_i32_0 = arith.constant 0 : i32
    %c0_i32_1 = arith.constant 0 : i32
    return %c0_i32, %c0_i32_0 : i32, i32
  }
  func.func @transform_12(%arg0: i32) -> (i32, i32) {
    %c0_i32 = arith.constant 0 : i32
    %c0_i32_0 = arith.constant 0 : i32
    %c0_i32_1 = arith.constant 0 : i32
    return %c0_i32, %c0_i32_0 : i32, i32
  }
  func.func @transform_13(%arg0: i32) -> (i32, i32) {
    %c0_i32 = arith.constant 0 : i32
    %c0_i32_0 = arith.constant 0 : i32
    return %arg0, %c0_i32 : i32, i32
  }
}

</mosaic_0001>

<llo_original>
// kernel: tpu_custom_call.1
$region0: #{tpu_custom_call.1}
  #allocation0 [shape = 'u32[]', space=smem, size = 0x4, offset = 0x4, fixed_abs, tag = 'smem constant byte address 0x4 - core index']
  #allocation1 [shape = 'u32[144,128]{1,0:T(1,128)}', space=vmem, size = 0x12000, scoped, tag = 'internal scratch']
  %s0 = inlined_call_operand.vmem [shape: f32[16,32], index: 0, kind: input, shape index: {}]
  %s1 = inlined_call_operand.vmem [shape: f32[1,32], index: 1, kind: input, shape index: {}]
  %s2 = inlined_call_operand.vmem [shape: f32[1,32], index: 2, kind: input, shape index: {}]
  %s3 = inlined_call_operand.vmem [shape: bf16[32,96], index: 3, kind: input, shape index: {}]
  %s4 = inlined_call_operand.vmem [shape: f32[1,96], index: 4, kind: input, shape index: {}]
  %s5 = inlined_call_operand.vmem [shape: bf16[32,32], index: 5, kind: input, shape index: {}]
  %s6 = inlined_call_operand.vmem [shape: f32[1,32], index: 6, kind: input, shape index: {}]
  %s7 = inlined_call_operand.vmem [shape: f32[1,32], index: 7, kind: input, shape index: {}]
  %s8 = inlined_call_operand.vmem [shape: f32[1,32], index: 8, kind: input, shape index: {}]
  %s9 = inlined_call_operand.vmem [shape: bf16[32,128], index: 9, kind: input, shape index: {}]
  %s10 = inlined_call_operand.vmem [shape: f32[1,128], index: 10, kind: input, shape index: {}]
  %s11 = inlined_call_operand.vmem [shape: bf16[128,32], index: 11, kind: input, shape index: {}]
  %s12 = inlined_call_operand.vmem [shape: f32[1,32], index: 12, kind: input, shape index: {}]
  %s13 = inlined_call_operand.hbm [shape: f32[16,32], index: 13, kind: output, shape index: {}]
  %s14 = sld [smem:[#allocation0]]
  $region62: #{tpu_custom_call.1} parent=0
    _
  %s16 = ssub.s32 1, %s14
  %s17 = scalar_select 0, %s16, %s14
  $region1: #{tpu_custom_call.1} parent=0
    #allocation2 [shape = 'u8[8192]{0}', space=vmem, size = 0x2000, scoped, tag = 'output window, operand 0, single buffered']
    #allocation3 [shape = 's32[1]{0}', space=sflag, size = 0x4, scoped, tag = 'scoped memory for tpu_custom_call.1']
    %18 = vsyncpa [#allocation3], 0
    // Predicated region
    $region2: #{tpu_custom_call.1} parent=1 // pred_check
      _
    $region3: #{tpu_custom_call.1} parent=1 // pred_check_branch
      %20 = sbr.rel (0) target = $region5
    $region4: #{tpu_custom_call.1} parent=1 // pred_region
      _
    $region5: #{tpu_custom_call.1} parent=1 // pred_fallthru
      _
    // Predicated region
    $region6: #{tpu_custom_call.1} parent=1 // pred_check
      _
    $region7: #{tpu_custom_call.1} parent=1 // pred_check_branch
      %22 = sbr.rel (0) target = $region9
    $region8: #{tpu_custom_call.1} parent=1 // pred_region
      _
    $region9: #{tpu_custom_call.1} parent=1 // pred_fallthru
      _
    // Predicated region
    $region10: #{tpu_custom_call.1} parent=1 // pred_check
      _
    $region11: #{tpu_custom_call.1} parent=1 // pred_check_branch
      %24 = sbr.rel (0) target = $region13
    $region12: #{tpu_custom_call.1} parent=1 // pred_region
      _
    $region13: #{tpu_custom_call.1} parent=1 // pred_fallthru
      _
    // Predicated region
    $region14: #{tpu_custom_call.1} parent=1 // pred_check
      _
    $region15: #{tpu_custom_call.1} parent=1 // pred_check_branch
      %26 = sbr.rel (0) target = $region17
    $region16: #{tpu_custom_call.1} parent=1 // pred_region
      _
    $region17: #{tpu_custom_call.1} parent=1 // pred_fallthru
      _
    // Predicated region
    $region18: #{tpu_custom_call.1} parent=1 // pred_check
      _
    $region19: #{tpu_custom_call.1} parent=1 // pred_check_branch
      %28 = sbr.rel (0) target = $region21
    $region20: #{tpu_custom_call.1} parent=1 // pred_region
      _
    $region21: #{tpu_custom_call.1} parent=1 // pred_fallthru
      _
    // Predicated region
    $region22: #{tpu_custom_call.1} parent=1 // pred_check
      _
    $region23: #{tpu_custom_call.1} parent=1 // pred_check_branch
      %30 = sbr.rel (0) target = $region25
    $region24: #{tpu_custom_call.1} parent=1 // pred_region
      _
    $region25: #{tpu_custom_call.1} parent=1 // pred_fallthru
      _
    // Predicated region
    $region26: #{tpu_custom_call.1} parent=1 // pred_check
      _
    $region27: #{tpu_custom_call.1} parent=1 // pred_check_branch
      %32 = sbr.rel (0) target = $region29
    $region28: #{tpu_custom_call.1} parent=1 // pred_region
      _
    $region29: #{tpu_custom_call.1} parent=1 // pred_fallthru
      _
    // Predicated region
    $region30: #{tpu_custom_call.1} parent=1 // pred_check
      _
    $region31: #{tpu_custom_call.1} parent=1 // pred_check_branch
      %34 = sbr.rel (0) target = $region33
    $region32: #{tpu_custom_call.1} parent=1 // pred_region
      _
    $region33: #{tpu_custom_call.1} parent=1 // pred_fallthru
      _
    // Predicated region
    $region34: #{tpu_custom_call.1} parent=1 // pred_check
      _
    $region35: #{tpu_custom_call.1} parent=1 // pred_check_branch
      %36 = sbr.rel (0) target = $region37
    $region36: #{tpu_custom_call.1} parent=1 // pred_region
      _
    $region37: #{tpu_custom_call.1} parent=1 // pred_fallthru
      _
    // Predicated region
    $region38: #{tpu_custom_call.1} parent=1 // pred_check
      _
    $region39: #{tpu_custom_call.1} parent=1 // pred_check_branch
      %38 = sbr.rel (0) target = $region41
    $region40: #{tpu_custom_call.1} parent=1 // pred_region
      _
    $region41: #{tpu_custom_call.1} parent=1 // pred_fallthru
      _
    // Predicated region
    $region42: #{tpu_custom_call.1} parent=1 // pred_check
      _
    $region43: #{tpu_custom_call.1} parent=1 // pred_check_branch
      %40 = sbr.rel (0) target = $region45
    $region44: #{tpu_custom_call.1} parent=1 // pred_region
      _
    $region45: #{tpu_custom_call.1} parent=1 // pred_fallthru
      _
    // Predicated region
    $region46: #{tpu_custom_call.1} parent=1 // pred_check
      _
    $region47: #{tpu_custom_call.1} parent=1 // pred_check_branch
      %42 = sbr.rel (0) target = $region49
    $region48: #{tpu_custom_call.1} parent=1 // pred_region
      _
    $region49: #{tpu_custom_call.1} parent=1 // pred_fallthru
      _
    // Predicated region
    $region50: #{tpu_custom_call.1} parent=1 // pred_check
      _
    $region51: #{tpu_custom_call.1} parent=1 // pred_check_branch
      %44 = sbr.rel (0) target = $region53
    $region52: #{tpu_custom_call.1} parent=1 // pred_region
      _
    $region53: #{tpu_custom_call.1} parent=1 // pred_fallthru
      _
    %v46 = vld [vmem:[%s0] sm:$0xff]
    %v47 = vld [vmem:[%s0 + $0x8] sm:$0xff]
    %v48 = vld [vmem:[%s1] sm:$0x1]
    %v49 = vld [vmem:[%s2] sm:$0x1]
    %vm50 = vcmask 261120
    %v51 = vsel %vm50, %v46, 0.0
    %52 = vadd.xlane.f32.xlu0 %v51
    %v53 = vpop.xlane.xlu0 %52
    %v54 = vsel %vm50, %v47, 0.0
    %55 = vadd.xlane.f32.xlu0 %v54
    %v56 = vpop.xlane.xlu0 %55
    %v57 = vrcp.pop 32.0
    %v58 = vmul.f32 %v53, %v57
    %v59 = vmul.f32 %v56, %v57
    %v60 = vsub.f32 %v46, %v58
    %v61 = vsub.f32 %v47, %v59
    %v62 = vmul.f32 %v60, %v60
    %v63 = vmul.f32 %v61, %v61
    %v64 = vsel %vm50, %v62, 0.0
    %65 = vadd.xlane.f32.xlu0 %v64
    %v66 = vpop.xlane.xlu0 %65
    %v67 = vsel %vm50, %v63, 0.0
    %68 = vadd.xlane.f32.xlu0 %v67
    %v69 = vpop.xlane.xlu0 %68
    %v70 = vmul.f32 %v66, %v57
    %v71 = vmul.f32 %v69, %v57
    %v72 = vadd.f32 %v70, 1e-05
    %v73 = vadd.f32 %v71, 1e-05
    %v74 = vrsqrt.pop %v72
    %v75 = vrsqrt.pop %v73
    %v76 = vmul.f32 %v60, %v74
    %v77 = vmul.f32 %v61, %v75
    %v79 = vlaneseq
    %v80 = vshrl.u32 %v79, 7
    %v81 = vsub.s32 0, %v80
    %v82 = vrot.slane %v48, %v81
    %v84 = vmul.f32 %v76, %v82
    %v85 = vmul.f32 %v77, %v82
    %v87 = vlaneseq
    %v88 = vshrl.u32 %v87, 7
    %v89 = vsub.s32 0, %v88
    %v90 = vrot.slane %v49, %v89
    %v92 = vadd.f32 %v84, %v90
    %v93 = vadd.f32 %v85, %v90
    %v94 = vpack.c.bf16 %v93, %v92
    %v95 = vld [vmem:[%s3] sm:$0xf]
    %v96 = vld [vmem:[%s3 + $0x4] sm:$0xf]
    %v97 = vld [vmem:[%s3 + $0x8] sm:$0xf]
    %v98 = vld [vmem:[%s3 + $0xc] sm:$0xf]
    %v99 = vld [vmem:[%s4] sm:$0x1]
    %v101 = vlaneseq
    %v102 = vshrl.u32 %v101, 7
    %v103 = vsub.s32 0, %v102
    %v104 = vrot.slane %v99, %v103
    %v110 = vunpack.c.l.b16 %v95
    %v111 = vunpack.c.l.b16 %v96
    %v112 = vunpack.c.l.b16 %v97
    %v113 = vunpack.c.l.b16 %v98
    %v114 = vpack.c.b16 %v111, %v110
    %v115 = vpack.c.b16 %v113, %v112
    %v119 = vsel %vm50, %v94, 0
    %121 = vmatprep.subr.bf16.mxu0 0
    %122 = vmatpush1.bf16.msra.mxu0 %v114
    %123 = vmatprep.subr.bf16.mxu0 0
    %124 = vmatpush1.bf16.msra.mxu0 %v115
    %125 = vmatprep.subr.bf16.mxu0 0
    %126 = vmatpush1.bf16.msra.mxu0 0
    %127 = vmatprep.subr.bf16.mxu0 0
    %128 = vmatpush1.bf16.msra.mxu0 0
    %129 = vmatprep.subr.bf16.mxu0 0
    %130 = vmatpush1.bf16.msra.mxu0 0
    %131 = vmatprep.subr.bf16.mxu0 0
    %132 = vmatpush1.bf16.msra.mxu0 0
    %133 = vmatprep.subr.bf16.mxu0 0
    %134 = vmatpush1.bf16.msra.mxu0 0
    %135 = vmatprep.subr.bf16.mxu0 0
    %136 = vmatpush1.bf16.msra.mxu0 0
    %137 = vmatprep.subr.bf16.mxu0 0
    %138 = vmatpush1.bf16.msra.mxu0 0
    %139 = vmatprep.subr.bf16.mxu0 0
    %140 = vmatpush1.bf16.msra.mxu0 0
    %141 = vmatprep.subr.bf16.mxu0 0
    %142 = vmatpush1.bf16.msra.mxu0 0
    %143 = vmatprep.subr.bf16.mxu0 0
    %144 = vmatpush1.bf16.msra.mxu0 0
    %145 = vmatprep.subr.bf16.mxu0 0
    %146 = vmatpush1.bf16.msra.mxu0 0
    %147 = vmatprep.subr.bf16.mxu0 0
    %148 = vmatpush1.bf16.msra.mxu0 0
    %149 = vmatprep.subr.bf16.mxu0 0
    %150 = vmatpush1.bf16.msra.mxu0 0
    %151 = vmatprep.subr.bf16.mxu0 0
    %152 = vmatpush1.bf16.msra.mxu0 0
    %153 = vmatprep.mubr.bf16.mxu0 0
    %154 = vmatmul.mubr.bf16.gmra.mrb[0].mxu0 %v119
    %v155 = vpop.f32.mrb[0].mxu0
    %v156 = vadd.f32 %v104, %v155
    %v157 = vpop.f32.mrb[0].mxu0
    %v158 = vpop.f32.mrb[0].mxu0
    %v159 = vadd.f32 %v104, %v158
    %v160 = vpop.f32.mrb[0].mxu0
    %161 = vdwg.mxu0
    %v162 = vpack.c.bf16 %v156, %v156
    %v163 = vpack.c.bf16 %v159, %v159
    %165 = vrot.lane.b32.xlu0 %v162, 96
    %v166 = vpop.permute.xlu0 %165
    %vm167 = vcmask 64512
    %v169 = vsel %vm167, %v162, 0
    %v172 = vsel %vm167, %v166, 0
    %174 = vmatprep.subr.bf16.mxu0 0
    %175 = vmatpush1.bf16.xpose.msra.mxu0 %v172
    %176 = vmatprep.subr.bf16.mxu0 0
    %177 = vmatpush1.bf16.xpose.msra.mxu0 0
    %178 = vmatprep.subr.bf16.mxu0 0
    %179 = vmatpush1.bf16.xpose.msra.mxu0 0
    %180 = vmatprep.subr.bf16.mxu0 0
    %181 = vmatpush1.bf16.xpose.msra.mxu0 0
    %182 = vmatprep.subr.bf16.mxu0 0
    %183 = vmatpush1.bf16.xpose.msra.mxu0 0
    %184 = vmatprep.subr.bf16.mxu0 0
    %185 = vmatpush1.bf16.xpose.msra.mxu0 0
    %186 = vmatprep.subr.bf16.mxu0 0
    %187 = vmatpush1.bf16.xpose.msra.mxu0 0
    %188 = vmatprep.subr.bf16.mxu0 0
    %189 = vmatpush1.bf16.xpose.msra.mxu0 0
    %190 = vmatprep.subr.bf16.mxu0 0
    %191 = vmatpush1.bf16.xpose.msra.mxu0 0
    %192 = vmatprep.subr.bf16.mxu0 0
    %193 = vmatpush1.bf16.xpose.msra.mxu0 0
    %194 = vmatprep.subr.bf16.mxu0 0
    %195 = vmatpush1.bf16.xpose.msra.mxu0 0
    %196 = vmatprep.subr.bf16.mxu0 0
    %197 = vmatpush1.bf16.xpose.msra.mxu0 0
    %198 = vmatprep.subr.bf16.mxu0 0
    %199 = vmatpush1.bf16.xpose.msra.mxu0 0
    %200 = vmatprep.subr.bf16.mxu0 0
    %201 = vmatpush1.bf16.xpose.msra.mxu0 0
    %202 = vmatprep.subr.bf16.mxu0 0
    %203 = vmatpush1.bf16.xpose.msra.mxu0 0
    %204 = vmatprep.subr.bf16.mxu0 0
    %205 = vmatpush1.bf16.xpose.msra.mxu0 0
    %206 = vmatprep.mubr.bf16.mxu0 0
    %207 = vmatmul.mubr.bf16.gmra.mrb[0].mxu0 %v169
    %v208 = vpop.f32.mrb[0].mxu0
    %v209 = vadd.f32 0.0, %v208
    %v210 = vpop.f32.mrb[0].mxu0
    %v211 = vpop.f32.mrb[0].mxu0
    %v212 = vpop.f32.mrb[0].mxu0
    %213 = vdwg.mxu0
    %215 = vrot.lane.b32.xlu0 %v163, 96
    %v216 = vpop.permute.xlu0 %215
    %v218 = vsel %vm167, %v163, 0
    %v221 = vsel %vm167, %v216, 0
    %223 = vmatprep.subr.bf16.mxu0 0
    %224 = vmatpush1.bf16.xpose.msra.mxu0 %v221
    %225 = vmatprep.subr.bf16.mxu0 0
    %226 = vmatpush1.bf16.xpose.msra.mxu0 0
    %227 = vmatprep.subr.bf16.mxu0 0
    %228 = vmatpush1.bf16.xpose.msra.mxu0 0
    %229 = vmatprep.subr.bf16.mxu0 0
    %230 = vmatpush1.bf16.xpose.msra.mxu0 0
    %231 = vmatprep.subr.bf16.mxu0 0
    %232 = vmatpush1.bf16.xpose.msra.mxu0 0
    %233 = vmatprep.subr.bf16.mxu0 0
    %234 = vmatpush1.bf16.xpose.msra.mxu0 0
    %235 = vmatprep.subr.bf16.mxu0 0
    %236 = vmatpush1.bf16.xpose.msra.mxu0 0
    %237 = vmatprep.subr.bf16.mxu0 0
    %238 = vmatpush1.bf16.xpose.msra.mxu0 0
    %239 = vmatprep.subr.bf16.mxu0 0
    %240 = vmatpush1.bf16.xpose.msra.mxu0 0
    %241 = vmatprep.subr.bf16.mxu0 0
    %242 = vmatpush1.bf16.xpose.msra.mxu0 0
    %243 = vmatprep.subr.bf16.mxu0 0
    %244 = vmatpush1.bf16.xpose.msra.mxu0 0
    %245 = vmatprep.subr.bf16.mxu0 0
    %246 = vmatpush1.bf16.xpose.msra.mxu0 0
    %247 = vmatprep.subr.bf16.mxu0 0
    %248 = vmatpush1.bf16.xpose.msra.mxu0 0
    %249 = vmatprep.subr.bf16.mxu0 0
    %250 = vmatpush1.bf16.xpose.msra.mxu0 0
    %251 = vmatprep.subr.bf16.mxu0 0
    %252 = vmatpush1.bf16.xpose.msra.mxu0 0
    %253 = vmatprep.subr.bf16.mxu0 0
    %254 = vmatpush1.bf16.xpose.msra.mxu0 0
    %255 = vmatprep.mubr.bf16.mxu0 0
    %256 = vmatmul.mubr.bf16.gmra.mrb[0].mxu0 %v218
    %v257 = vpop.f32.mrb[0].mxu0
    %v258 = vadd.f32 0.0, %v257
    %v259 = vpop.f32.mrb[0].mxu0
    %v260 = vpop.f32.mrb[0].mxu0
    %v261 = vpop.f32.mrb[0].mxu0
    %262 = vdwg.mxu0
    %v263 = vsel %vm167, %v209, -inf
    %264 = vmax.xlane.f32.xlu0 %v263
    %v265 = vpop.xlane.xlu0 %264
    %v266 = vsel %vm167, %v258, -inf
    %267 = vmax.xlane.f32.xlu0 %v266
    %v268 = vpop.xlane.xlu0 %267
    %v269 = vsub.f32 %v209, %v265
    %v270 = vsub.f32 %v258, %v268
    %v271 = vmul.f32 %v269, 1.442695
    %v272 = vpow.pop %v271
    %v273 = vmul.f32 %v270, 1.442695
    %v274 = vpow.pop %v273
    %v275 = vsel %vm167, %v272, 0.0
    %276 = vadd.xlane.f32.xlu0 %v275
    %v277 = vpop.xlane.xlu0 %276
    %v278 = vsel %vm167, %v274, 0.0
    %279 = vadd.xlane.f32.xlu0 %v278
    %v280 = vpop.xlane.xlu0 %279
    %v281 = vrcp.pop %v277
    %v282 = vrcp.pop %v280
    %v283 = vmul.f32 %v272, %v281
    %v284 = vmul.f32 %v274, %v282
    %v285 = vpack.c.bf16 %v283, %v283
    %v286 = vpack.c.bf16 %v284, %v284
    %287 = vrot.lane.b32.xlu0 %v162, 64
    %v288 = vpop.permute.xlu0 %287
    %v290 = vsel %vm167, %v285, 0
    %vm292 = vcmask 1043456
    %v294 = vsel %vm292, %v288, 0
    %296 = vmatprep.subr.bf16.mxu0 0
    %297 = vmatpush1.bf16.msra.mxu0 %v294
    %298 = vmatprep.subr.bf16.mxu0 0
    %299 = vmatpush1.bf16.msra.mxu0 0
    %300 = vmatprep.subr.bf16.mxu0 0
    %301 = vmatpush1.bf16.msra.mxu0 0
    %302 = vmatprep.subr.bf16.mxu0 0
    %303 = vmatpush1.bf16.msra.mxu0 0
    %304 = vmatprep.subr.bf16.mxu0 0
    %305 = vmatpush1.bf16.msra.mxu0 0
    %306 = vmatprep.subr.bf16.mxu0 0
    %307 = vmatpush1.bf16.msra.mxu0 0
    %308 = vmatprep.subr.bf16.mxu0 0
    %309 = vmatpush1.bf16.msra.mxu0 0
    %310 = vmatprep.subr.bf16.mxu0 0
    %311 = vmatpush1.bf16.msra.mxu0 0
    %312 = vmatprep.subr.bf16.mxu0 0
    %313 = vmatpush1.bf16.msra.mxu0 0
    %314 = vmatprep.subr.bf16.mxu0 0
    %315 = vmatpush1.bf16.msra.mxu0 0
    %316 = vmatprep.subr.bf16.mxu0 0
    %317 = vmatpush1.bf16.msra.mxu0 0
    %318 = vmatprep.subr.bf16.mxu0 0
    %319 = vmatpush1.bf16.msra.mxu0 0
    %320 = vmatprep.subr.bf16.mxu0 0
    %321 = vmatpush1.bf16.msra.mxu0 0
    %322 = vmatprep.subr.bf16.mxu0 0
    %323 = vmatpush1.bf16.msra.mxu0 0
    %324 = vmatprep.subr.bf16.mxu0 0
    %325 = vmatpush1.bf16.msra.mxu0 0
    %326 = vmatprep.subr.bf16.mxu0 0
    %327 = vmatpush1.bf16.msra.mxu0 0
    %328 = vmatprep.mubr.bf16.mxu0 0
    %329 = vmatmul.mubr.bf16.gmra.mrb[0].mxu0 %v290
    %v330 = vpop.f32.mrb[0].mxu0
    %v331 = vadd.f32 0.0, %v330
    %v332 = vpop.f32.mrb[0].mxu0
    %v333 = vpop.f32.mrb[0].mxu0
    %v334 = vpop.f32.mrb[0].mxu0
    %335 = vdwg.mxu0
    %336 = vrot.lane.b32.xlu0 %v163, 64
    %v337 = vpop.permute.xlu0 %336
    %v339 = vsel %vm167, %v286, 0
    %v342 = vsel %vm292, %v337, 0
    %344 = vmatprep.subr.bf16.mxu0 0
    %345 = vmatpush1.bf16.msra.mxu0 %v342
    %346 = vmatprep.subr.bf16.mxu0 0
    %347 = vmatpush1.bf16.msra.mxu0 0
    %348 = vmatprep.subr.bf16.mxu0 0
    %349 = vmatpush1.bf16.msra.mxu0 0
    %350 = vmatprep.subr.bf16.mxu0 0
    %351 = vmatpush1.bf16.msra.mxu0 0
    %352 = vmatprep.subr.bf16.mxu0 0
    %353 = vmatpush1.bf16.msra.mxu0 0
    %354 = vmatprep.subr.bf16.mxu0 0
    %355 = vmatpush1.bf16.msra.mxu0 0
    %356 = vmatprep.subr.bf16.mxu0 0
    %357 = vmatpush1.bf16.msra.mxu0 0
    %358 = vmatprep.subr.bf16.mxu0 0
    %359 = vmatpush1.bf16.msra.mxu0 0
    %360 = vmatprep.subr.bf16.mxu0 0
    %361 = vmatpush1.bf16.msra.mxu0 0
    %362 = vmatprep.subr.bf16.mxu0 0
    %363 = vmatpush1.bf16.msra.mxu0 0
    %364 = vmatprep.subr.bf16.mxu0 0
    %365 = vmatpush1.bf16.msra.mxu0 0
    %366 = vmatprep.subr.bf16.mxu0 0
    %367 = vmatpush1.bf16.msra.mxu0 0
    %368 = vmatprep.subr.bf16.mxu0 0
    %369 = vmatpush1.bf16.msra.mxu0 0
    %370 = vmatprep.subr.bf16.mxu0 0
    %371 = vmatpush1.bf16.msra.mxu0 0
    %372 = vmatprep.subr.bf16.mxu0 0
    %373 = vmatpush1.bf16.msra.mxu0 0
    %374 = vmatprep.subr.bf16.mxu0 0
    %375 = vmatpush1.bf16.msra.mxu0 0
    %376 = vmatprep.mubr.bf16.mxu0 0
    %377 = vmatmul.mubr.bf16.gmra.mrb[0].mxu0 %v339
    %v378 = vpop.f32.mrb[0].mxu0
    %v379 = vadd.f32 0.0, %v378
    %v380 = vpop.f32.mrb[0].mxu0
    %v381 = vpop.f32.mrb[0].mxu0
    %v382 = vpop.f32.mrb[0].mxu0
    %383 = vdwg.mxu0
    %v384 = vpack.c.bf16 %v379, %v331
    %v385 = vld [vmem:[%s5] sm:$0xf]
    %386 = vrot.lane.b32.xlu0 %v162, 120
    %v387 = vpop.permute.xlu0 %386
    %388 = vrot.lane.b32.xlu0 %v162, 88
    %v389 = vpop.permute.xlu0 %388
    %v391 = vsel %vm167, %v387, 0
    %v394 = vsel %vm167, %v389, 0
    %396 = vmatprep.subr.bf16.mxu0 0
    %397 = vmatpush1.bf16.xpose.msra.mxu0 %v394
    %398 = vmatprep.subr.bf16.mxu0 0
    %399 = vmatpush1.bf16.xpose.msra.mxu0 0
    %400 = vmatprep.subr.bf16.mxu0 0
    %401 = vmatpush1.bf16.xpose.msra.mxu0 0
    %402 = vmatprep.subr.bf16.mxu0 0
    %403 = vmatpush1.bf16.xpose.msra.mxu0 0
    %404 = vmatprep.subr.bf16.mxu0 0
    %405 = vmatpush1.bf16.xpose.msra.mxu0 0
    %406 = vmatprep.subr.bf16.mxu0 0
    %407 = vmatpush1.bf16.xpose.msra.mxu0 0
    %408 = vmatprep.subr.bf16.mxu0 0
    %409 = vmatpush1.bf16.xpose.msra.mxu0 0
    %410 = vmatprep.subr.bf16.mxu0 0
    %411 = vmatpush1.bf16.xpose.msra.mxu0 0
    %412 = vmatprep.subr.bf16.mxu0 0
    %413 = vmatpush1.bf16.xpose.msra.mxu0 0
    %414 = vmatprep.subr.bf16.mxu0 0
    %415 = vmatpush1.bf16.xpose.msra.mxu0 0
    %416 = vmatprep.subr.bf16.mxu0 0
    %417 = vmatpush1.bf16.xpose.msra.mxu0 0
    %418 = vmatprep.subr.bf16.mxu0 0
    %419 = vmatpush1.bf16.xpose.msra.mxu0 0
    %420 = vmatprep.subr.bf16.mxu0 0
    %421 = vmatpush1.bf16.xpose.msra.mxu0 0
    %422 = vmatprep.subr.bf16.mxu0 0
    %423 = vmatpush1.bf16.xpose.msra.mxu0 0
    %424 = vmatprep.subr.bf16.mxu0 0
    %425 = vmatpush1.bf16.xpose.msra.mxu0 0
    %426 = vmatprep.subr.bf16.mxu0 0
    %427 = vmatpush1.bf16.xpose.msra.mxu0 0
    %428 = vmatprep.mubr.bf16.mxu0 0
    %429 = vmatmul.mubr.bf16.gmra.mrb[0].mxu0 %v391
    %v430 = vpop.f32.mrb[0].mxu0
    %v431 = vadd.f32 0.0, %v430
    %v432 = vpop.f32.mrb[0].mxu0
    %v433 = vpop.f32.mrb[0].mxu0
    %v434 = vpop.f32.mrb[0].mxu0
    %435 = vdwg.mxu0
    %436 = vrot.lane.b32.xlu0 %v163, 120
    %v437 = vpop.permute.xlu0 %436
    %438 = vrot.lane.b32.xlu0 %v163, 88
    %v439 = vpop.permute.xlu0 %438
    %v441 = vsel %vm167, %v437, 0
    %v444 = vsel %vm167, %v439, 0
    %446 = vmatprep.subr.bf16.mxu0 0
    %447 = vmatpush1.bf16.xpose.msra.mxu0 %v444
    %448 = vmatprep.subr.bf16.mxu0 0
    %449 = vmatpush1.bf16.xpose.msra.mxu0 0
    %450 = vmatprep.subr.bf16.mxu0 0
    %451 = vmatpush1.bf16.xpose.msra.mxu0 0
    %452 = vmatprep.subr.bf16.mxu0 0
    %453 = vmatpush1.bf16.xpose.msra.mxu0 0
    %454 = vmatprep.subr.bf16.mxu0 0
    %455 = vmatpush1.bf16.xpose.msra.mxu0 0
    %456 = vmatprep.subr.bf16.mxu0 0
    %457 = vmatpush1.bf16.xpose.msra.mxu0 0
    %458 = vmatprep.subr.bf16.mxu0 0
    %459 = vmatpush1.bf16.xpose.msra.mxu0 0
    %460 = vmatprep.subr.bf16.mxu0 0
    %461 = vmatpush1.bf16.xpose.msra.mxu0 0
    %462 = vmatprep.subr.bf16.mxu0 0
    %463 = vmatpush1.bf16.xpose.msra.mxu0 0
    %464 = vmatprep.subr.bf16.mxu0 0
    %465 = vmatpush1.bf16.xpose.msra.mxu0 0
    %466 = vmatprep.subr.bf16.mxu0 0
    %467 = vmatpush1.bf16.xpose.msra.mxu0 0
    %468 = vmatprep.subr.bf16.mxu0 0
    %469 = vmatpush1.bf16.xpose.msra.mxu0 0
    %470 = vmatprep.subr.bf16.mxu0 0
    %471 = vmatpush1.bf16.xpose.msra.mxu0 0
    %472 = vmatprep.subr.bf16.mxu0 0
    %473 = vmatpush1.bf16.xpose.msra.mxu0 0
    %474 = vmatprep.subr.bf16.mxu0 0
    %475 = vmatpush1.bf16.xpose.msra.mxu0 0
    %476 = vmatprep.subr.bf16.mxu0 0
    %477 = vmatpush1.bf16.xpose.msra.mxu0 0
    %478 = vmatprep.mubr.bf16.mxu0 0
    %479 = vmatmul.mubr.bf16.gmra.mrb[0].mxu0 %v441
    %v480 = vpop.f32.mrb[0].mxu0
    %v481 = vadd.f32 0.0, %v480
    %v482 = vpop.f32.mrb[0].mxu0
    %v483 = vpop.f32.mrb[0].mxu0
    %v484 = vpop.f32.mrb[0].mxu0
    %485 = vdwg.mxu0
    %v486 = vsel %vm167, %v431, -inf
    %487 = vmax.xlane.f32.xlu0 %v486
    %v488 = vpop.xlane.xlu0 %487
    %v489 = vsel %vm167, %v481, -inf
    %490 = vmax.xlane.f32.xlu0 %v489
    %v491 = vpop.xlane.xlu0 %490
    %v492 = vsub.f32 %v431, %v488
    %v493 = vsub.f32 %v481, %v491
    %v494 = vmul.f32 %v492, 1.442695
    %v495 = vpow.pop %v494
    %v496 = vmul.f32 %v493, 1.442695
    %v497 = vpow.pop %v496
    %v498 = vsel %vm167, %v495, 0.0
    %499 = vadd.xlane.f32.xlu0 %v498
    %v500 = vpop.xlane.xlu0 %499
    %v501 = vsel %vm167, %v497, 0.0
    %502 = vadd.xlane.f32.xlu0 %v501
    %v503 = vpop.xlane.xlu0 %502
    %v504 = vrcp.pop %v500
    %v505 = vrcp.pop %v503
    %v506 = vmul.f32 %v495, %v504
    %v507 = vmul.f32 %v497, %v505
    %v508 = vpack.c.bf16 %v506, %v506
    %v509 = vpack.c.bf16 %v507, %v507
    %510 = vrot.lane.b32.xlu0 %v162, 56
    %v511 = vpop.permute.xlu0 %510
    %v513 = vsel %vm167, %v508, 0
    %v516 = vsel %vm292, %v511, 0
    %518 = vmatprep.subr.bf16.mxu0 0
    %519 = vmatpush1.bf16.msra.mxu0 %v516
    %520 = vmatprep.subr.bf16.mxu0 0
    %521 = vmatpush1.bf16.msra.mxu0 0
    %522 = vmatprep.subr.bf16.mxu0 0
    %523 = vmatpush1.bf16.msra.mxu0 0
    %524 = vmatprep.subr.bf16.mxu0 0
    %525 = vmatpush1.bf16.msra.mxu0 0
    %526 = vmatprep.subr.bf16.mxu0 0
    %527 = vmatpush1.bf16.msra.mxu0 0
    %528 = vmatprep.subr.bf16.mxu0 0
    %529 = vmatpush1.bf16.msra.mxu0 0
    %530 = vmatprep.subr.bf16.mxu0 0
    %531 = vmatpush1.bf16.msra.mxu0 0
    %532 = vmatprep.subr.bf16.mxu0 0
    %533 = vmatpush1.bf16.msra.mxu0 0
    %534 = vmatprep.subr.bf16.mxu0 0
    %535 = vmatpush1.bf16.msra.mxu0 0
    %536 = vmatprep.subr.bf16.mxu0 0
    %537 = vmatpush1.bf16.msra.mxu0 0
    %538 = vmatprep.subr.bf16.mxu0 0
    %539 = vmatpush1.bf16.msra.mxu0 0
    %540 = vmatprep.subr.bf16.mxu0 0
    %541 = vmatpush1.bf16.msra.mxu0 0
    %542 = vmatprep.subr.bf16.mxu0 0
    %543 = vmatpush1.bf16.msra.mxu0 0
    %544 = vmatprep.subr.bf16.mxu0 0
    %545 = vmatpush1.bf16.msra.mxu0 0
    %546 = vmatprep.subr.bf16.mxu0 0
    %547 = vmatpush1.bf16.msra.mxu0 0
    %548 = vmatprep.subr.bf16.mxu0 0
    %549 = vmatpush1.bf16.msra.mxu0 0
    %550 = vmatprep.mubr.bf16.mxu0 0
    %551 = vmatmul.mubr.bf16.gmra.mrb[0].mxu0 %v513
    %v552 = vpop.f32.mrb[0].mxu0
    %v553 = vadd.f32 0.0, %v552
    %v554 = vpop.f32.mrb[0].mxu0
    %v555 = vpop.f32.mrb[0].mxu0
    %v556 = vpop.f32.mrb[0].mxu0
    %557 = vdwg.mxu0
    %558 = vrot.lane.b32.xlu0 %v163, 56
    %v559 = vpop.permute.xlu0 %558
    %v561 = vsel %vm167, %v509, 0
    %v564 = vsel %vm292, %v559, 0
    %566 = vmatprep.subr.bf16.mxu0 0
    %567 = vmatpush1.bf16.msra.mxu0 %v564
    %568 = vmatprep.subr.bf16.mxu0 0
    %569 = vmatpush1.bf16.msra.mxu0 0
    %570 = vmatprep.subr.bf16.mxu0 0
    %571 = vmatpush1.bf16.msra.mxu0 0
    %572 = vmatprep.subr.bf16.mxu0 0
    %573 = vmatpush1.bf16.msra.mxu0 0
    %574 = vmatprep.subr.bf16.mxu0 0
    %575 = vmatpush1.bf16.msra.mxu0 0
    %576 = vmatprep.subr.bf16.mxu0 0
    %577 = vmatpush1.bf16.msra.mxu0 0
    %578 = vmatprep.subr.bf16.mxu0 0
    %579 = vmatpush1.bf16.msra.mxu0 0
    %580 = vmatprep.subr.bf16.mxu0 0
    %581 = vmatpush1.bf16.msra.mxu0 0
    %582 = vmatprep.subr.bf16.mxu0 0
    %583 = vmatpush1.bf16.msra.mxu0 0
    %584 = vmatprep.subr.bf16.mxu0 0
    %585 = vmatpush1.bf16.msra.mxu0 0
    %586 = vmatprep.subr.bf16.mxu0 0
    %587 = vmatpush1.bf16.msra.mxu0 0
    %588 = vmatprep.subr.bf16.mxu0 0
    %589 = vmatpush1.bf16.msra.mxu0 0
    %590 = vmatprep.subr.bf16.mxu0 0
    %591 = vmatpush1.bf16.msra.mxu0 0
    %592 = vmatprep.subr.bf16.mxu0 0
    %593 = vmatpush1.bf16.msra.mxu0 0
    %594 = vmatprep.subr.bf16.mxu0 0
    %595 = vmatpush1.bf16.msra.mxu0 0
    %596 = vmatprep.subr.bf16.mxu0 0
    %597 = vmatpush1.bf16.msra.mxu0 0
    %598 = vmatprep.mubr.bf16.mxu0 0
    %599 = vmatmul.mubr.bf16.gmra.mrb[0].mxu0 %v561
    %v600 = vpop.f32.mrb[0].mxu0
    %v601 = vadd.f32 0.0, %v600
    %v602 = vpop.f32.mrb[0].mxu0
    %v603 = vpop.f32.mrb[0].mxu0
    %v604 = vpop.f32.mrb[0].mxu0
    %605 = vdwg.mxu0
    %v606 = vpack.c.bf16 %v601, %v553
    %v607 = vld [vmem:[%s5 + $0x4] sm:$0xf]
    %v609 = vsel %vm167, %v606, 0
    %v612 = vsel %vm292, %v607, 0
    %614 = vmatprep.subr.bf16.mxu0 0
    %615 = vmatpush1.bf16.msra.mxu0 %v612
    %616 = vmatprep.subr.bf16.mxu0 0
    %617 = vmatpush1.bf16.msra.mxu0 0
    %618 = vmatprep.subr.bf16.mxu0 0
    %619 = vmatpush1.bf16.msra.mxu0 0
    %620 = vmatprep.subr.bf16.mxu0 0
    %621 = vmatpush1.bf16.msra.mxu0 0
    %622 = vmatprep.subr.bf16.mxu0 0
    %623 = vmatpush1.bf16.msra.mxu0 0
    %624 = vmatprep.subr.bf16.mxu0 0
    %625 = vmatpush1.bf16.msra.mxu0 0
    %626 = vmatprep.subr.bf16.mxu0 0
    %627 = vmatpush1.bf16.msra.mxu0 0
    %628 = vmatprep.subr.bf16.mxu0 0
    %629 = vmatpush1.bf16.msra.mxu0 0
    %630 = vmatprep.subr.bf16.mxu0 0
    %631 = vmatpush1.bf16.msra.mxu0 0
    %632 = vmatprep.subr.bf16.mxu0 0
    %633 = vmatpush1.bf16.msra.mxu0 0
    %634 = vmatprep.subr.bf16.mxu0 0
    %635 = vmatpush1.bf16.msra.mxu0 0
    %636 = vmatprep.subr.bf16.mxu0 0
    %637 = vmatpush1.bf16.msra.mxu0 0
    %638 = vmatprep.subr.bf16.mxu0 0
    %639 = vmatpush1.bf16.msra.mxu0 0
    %640 = vmatprep.subr.bf16.mxu0 0
    %641 = vmatpush1.bf16.msra.mxu0 0
    %642 = vmatprep.subr.bf16.mxu0 0
    %643 = vmatpush1.bf16.msra.mxu0 0
    %644 = vmatprep.subr.bf16.mxu0 0
    %645 = vmatpush1.bf16.msra.mxu0 0
    %646 = vmatprep.mubr.bf16.mxu0 0
    %647 = vmatmul.mubr.bf16.gmra.mrb[0].mxu0 %v609
    %v648 = vpop.f32.mrb[0].mxu0
    %v649 = vadd.f32 0.0, %v648
    %v650 = vpop.f32.mrb[0].mxu0
    %v651 = vpop.f32.mrb[0].mxu0
    %v652 = vadd.f32 0.0, %v651
    %v653 = vpop.f32.mrb[0].mxu0
    %654 = vdwg.mxu0
    %v656 = vsel %vm167, %v384, 0
    %v659 = vsel %vm292, %v385, 0
    %661 = vmatprep.subr.bf16.mxu0 0
    %662 = vmatpush1.bf16.msra.mxu0 %v659
    %663 = vmatprep.subr.bf16.mxu0 0
    %664 = vmatpush1.bf16.msra.mxu0 0
    %665 = vmatprep.subr.bf16.mxu0 0
    %666 = vmatpush1.bf16.msra.mxu0 0
    %667 = vmatprep.subr.bf16.mxu0 0
    %668 = vmatpush1.bf16.msra.mxu0 0
    %669 = vmatprep.subr.bf16.mxu0 0
    %670 = vmatpush1.bf16.msra.mxu0 0
    %671 = vmatprep.subr.bf16.mxu0 0
    %672 = vmatpush1.bf16.msra.mxu0 0
    %673 = vmatprep.subr.bf16.mxu0 0
    %674 = vmatpush1.bf16.msra.mxu0 0
    %675 = vmatprep.subr.bf16.mxu0 0
    %676 = vmatpush1.bf16.msra.mxu0 0
    %677 = vmatprep.subr.bf16.mxu0 0
    %678 = vmatpush1.bf16.msra.mxu0 0
    %679 = vmatprep.subr.bf16.mxu0 0
    %680 = vmatpush1.bf16.msra.mxu0 0
    %681 = vmatprep.subr.bf16.mxu0 0
    %682 = vmatpush1.bf16.msra.mxu0 0
    %683 = vmatprep.subr.bf16.mxu0 0
    %684 = vmatpush1.bf16.msra.mxu0 0
    %685 = vmatprep.subr.bf16.mxu0 0
    %686 = vmatpush1.bf16.msra.mxu0 0
    %687 = vmatprep.subr.bf16.mxu0 0
    %688 = vmatpush1.bf16.msra.mxu0 0
    %689 = vmatprep.subr.bf16.mxu0 0
    %690 = vmatpush1.bf16.msra.mxu0 0
    %691 = vmatprep.subr.bf16.mxu0 0
    %692 = vmatpush1.bf16.msra.mxu0 0
    %693 = vmatprep.mubr.bf16.mxu0 0
    %694 = vmatmul.mubr.bf16.gmra.mrb[0].mxu0 %v656
    %v695 = vpop.f32.mrb[0].mxu0
    %v696 = vadd.f32 %v649, %v695
    %v697 = vpop.f32.mrb[0].mxu0
    %v698 = vpop.f32.mrb[0].mxu0
    %v699 = vadd.f32 %v652, %v698
    %v700 = vpop.f32.mrb[0].mxu0
    %701 = vdwg.mxu0
    %702 = vrot.lane.b32.xlu0 %v162, 112
    %v703 = vpop.permute.xlu0 %702
    %704 = vrot.lane.b32.xlu0 %v162, 80
    %v705 = vpop.permute.xlu0 %704
    %v707 = vsel %vm167, %v703, 0
    %v710 = vsel %vm167, %v705, 0
    %712 = vmatprep.subr.bf16.mxu0 0
    %713 = vmatpush1.bf16.xpose.msra.mxu0 %v710
    %714 = vmatprep.subr.bf16.mxu0 0
    %715 = vmatpush1.bf16.xpose.msra.mxu0 0
    %716 = vmatprep.subr.bf16.mxu0 0
    %717 = vmatpush1.bf16.xpose.msra.mxu0 0
    %718 = vmatprep.subr.bf16.mxu0 0
    %719 = vmatpush1.bf16.xpose.msra.mxu0 0
    %720 = vmatprep.subr.bf16.mxu0 0
    %721 = vmatpush1.bf16.xpose.msra.mxu0 0
    %722 = vmatprep.subr.bf16.mxu0 0
    %723 = vmatpush1.bf16.xpose.msra.mxu0 0
    %724 = vmatprep.subr.bf16.mxu0 0
    %725 = vmatpush1.bf16.xpose.msra.mxu0 0
    %726 = vmatprep.subr.bf16.mxu0 0
    %727 = vmatpush1.bf16.xpose.msra.mxu0 0
    %728 = vmatprep.subr.bf16.mxu0 0
    %729 = vmatpush1.bf16.xpose.msra.mxu0 0
    %730 = vmatprep.subr.bf16.mxu0 0
    %731 = vmatpush1.bf16.xpose.msra.mxu0 0
    %732 = vmatprep.subr.bf16.mxu0 0
    %733 = vmatpush1.bf16.xpose.msra.mxu0 0
    %734 = vmatprep.subr.bf16.mxu0 0
    %735 = vmatpush1.bf16.xpose.msra.mxu0 0
    %736 = vmatprep.subr.bf16.mxu0 0
    %737 = vmatpush1.bf16.xpose.msra.mxu0 0
    %738 = vmatprep.subr.bf16.mxu0 0
    %739 = vmatpush1.bf16.xpose.msra.mxu0 0
    %740 = vmatprep.subr.bf16.mxu0 0
    %741 = vmatpush1.bf16.xpose.msra.mxu0 0
    %742 = vmatprep.subr.bf16.mxu0 0
    %743 = vmatpush1.bf16.xpose.msra.mxu0 0
    %744 = vmatprep.mubr.bf16.mxu0 0
    %745 = vmatmul.mubr.bf16.gmra.mrb[0].mxu0 %v707
    %v746 = vpop.f32.mrb[0].mxu0
    %v747 = vadd.f32 0.0, %v746
    %v748 = vpop.f32.mrb[0].mxu0
    %v749 = vpop.f32.mrb[0].mxu0
    %v750 = vpop.f32.mrb[0].mxu0
    %751 = vdwg.mxu0
    %752 = vrot.lane.b32.xlu0 %v163, 112
    %v753 = vpop.permute.xlu0 %752
    %754 = vrot.lane.b32.xlu0 %v163, 80
    %v755 = vpop.permute.xlu0 %754
    %v757 = vsel %vm167, %v753, 0
    %v760 = vsel %vm167, %v755, 0
    %762 = vmatprep.subr.bf16.mxu0 0
    %763 = vmatpush1.bf16.xpose.msra.mxu0 %v760
    %764 = vmatprep.subr.bf16.mxu0 0
    %765 = vmatpush1.bf16.xpose.msra.mxu0 0
    %766 = vmatprep.subr.bf16.mxu0 0
    %767 = vmatpush1.bf16.xpose.msra.mxu0 0
    %768 = vmatprep.subr.bf16.mxu0 0
    %769 = vmatpush1.bf16.xpose.msra.mxu0 0
    %770 = vmatprep.subr.bf16.mxu0 0
    %771 = vmatpush1.bf16.xpose.msra.mxu0 0
    %772 = vmatprep.subr.bf16.mxu0 0
    %773 = vmatpush1.bf16.xpose.msra.mxu0 0
    %774 = vmatprep.subr.bf16.mxu0 0
    %775 = vmatpush1.bf16.xpose.msra.mxu0 0
    %776 = vmatprep.subr.bf16.mxu0 0
    %777 = vmatpush1.bf16.xpose.msra.mxu0 0
    %778 = vmatprep.subr.bf16.mxu0 0
    %779 = vmatpush1.bf16.xpose.msra.mxu0 0
    %780 = vmatprep.subr.bf16.mxu0 0
    %781 = vmatpush1.bf16.xpose.msra.mxu0 0
    %782 = vmatprep.subr.bf16.mxu0 0
    %783 = vmatpush1.bf16.xpose.msra.mxu0 0
    %784 = vmatprep.subr.bf16.mxu0 0
    %785 = vmatpush1.bf16.xpose.msra.mxu0 0
    %786 = vmatprep.subr.bf16.mxu0 0
    %787 = vmatpush1.bf16.xpose.msra.mxu0 0
    %788 = vmatprep.subr.bf16.mxu0 0
    %789 = vmatpush1.bf16.xpose.msra.mxu0 0
    %790 = vmatprep.subr.bf16.mxu0 0
    %791 = vmatpush1.bf16.xpose.msra.mxu0 0
    %792 = vmatprep.subr.bf16.mxu0 0
    %793 = vmatpush1.bf16.xpose.msra.mxu0 0
    %794 = vmatprep.mubr.bf16.mxu0 0
    %795 = vmatmul.mubr.bf16.gmra.mrb[0].mxu0 %v757
    %v796 = vpop.f32.mrb[0].mxu0
    %v797 = vadd.f32 0.0, %v796
    %v798 = vpop.f32.mrb[0].mxu0
    %v799 = vpop.f32.mrb[0].mxu0
    %v800 = vpop.f32.mrb[0].mxu0
    %801 = vdwg.mxu0
    %v802 = vsel %vm167, %v747, -inf
    %803 = vmax.xlane.f32.xlu0 %v802
    %v804 = vpop.xlane.xlu0 %803
    %v805 = vsel %vm167, %v797, -inf
    %806 = vmax.xlane.f32.xlu0 %v805
    %v807 = vpop.xlane.xlu0 %806
    %v808 = vsub.f32 %v747, %v804
    %v809 = vsub.f32 %v797, %v807
    %v810 = vmul.f32 %v808, 1.442695
    %v811 = vpow.pop %v810
    %v812 = vmul.f32 %v809, 1.442695
    %v813 = vpow.pop %v812
    %v814 = vsel %vm167, %v811, 0.0
    %815 = vadd.xlane.f32.xlu0 %v814
    %v816 = vpop.xlane.xlu0 %815
    %v817 = vsel %vm167, %v813, 0.0
    %818 = vadd.xlane.f32.xlu0 %v817
    %v819 = vpop.xlane.xlu0 %818
    %v820 = vrcp.pop %v816
    %v821 = vrcp.pop %v819
    %v822 = vmul.f32 %v811, %v820
    %v823 = vmul.f32 %v813, %v821
    %v824 = vpack.c.bf16 %v822, %v822
    %v825 = vpack.c.bf16 %v823, %v823
    %826 = vrot.lane.b32.xlu0 %v162, 48
    %v827 = vpop.permute.xlu0 %826
    %v829 = vsel %vm167, %v824, 0
    %v832 = vsel %vm292, %v827, 0
    %834 = vmatprep.subr.bf16.mxu0 0
    %835 = vmatpush1.bf16.msra.mxu0 %v832
    %836 = vmatprep.subr.bf16.mxu0 0
    %837 = vmatpush1.bf16.msra.mxu0 0
    %838 = vmatprep.subr.bf16.mxu0 0
    %839 = vmatpush1.bf16.msra.mxu0 0
    %840 = vmatprep.subr.bf16.mxu0 0
    %841 = vmatpush1.bf16.msra.mxu0 0
    %842 = vmatprep.subr.bf16.mxu0 0
    %843 = vmatpush1.bf16.msra.mxu0 0
    %844 = vmatprep.subr.bf16.mxu0 0
    %845 = vmatpush1.bf16.msra.mxu0 0
    %846 = vmatprep.subr.bf16.mxu0 0
    %847 = vmatpush1.bf16.msra.mxu0 0
    %848 = vmatprep.subr.bf16.mxu0 0
    %849 = vmatpush1.bf16.msra.mxu0 0
    %850 = vmatprep.subr.bf16.mxu0 0
    %851 = vmatpush1.bf16.msra.mxu0 0
    %852 = vmatprep.subr.bf16.mxu0 0
    %853 = vmatpush1.bf16.msra.mxu0 0
    %854 = vmatprep.subr.bf16.mxu0 0
    %855 = vmatpush1.bf16.msra.mxu0 0
    %856 = vmatprep.subr.bf16.mxu0 0
    %857 = vmatpush1.bf16.msra.mxu0 0
    %858 = vmatprep.subr.bf16.mxu0 0
    %859 = vmatpush1.bf16.msra.mxu0 0
    %860 = vmatprep.subr.bf16.mxu0 0
    %861 = vmatpush1.bf16.msra.mxu0 0
    %862 = vmatprep.subr.bf16.mxu0 0
    %863 = vmatpush1.bf16.msra.mxu0 0
    %864 = vmatprep.subr.bf16.mxu0 0
    %865 = vmatpush1.bf16.msra.mxu0 0
    %866 = vmatprep.mubr.bf16.mxu0 0
    %867 = vmatmul.mubr.bf16.gmra.mrb[0].mxu0 %v829
    %v868 = vpop.f32.mrb[0].mxu0
    %v869 = vadd.f32 0.0, %v868
    %v870 = vpop.f32.mrb[0].mxu0
    %v871 = vpop.f32.mrb[0].mxu0
    %v872 = vpop.f32.mrb[0].mxu0
    %873 = vdwg.mxu0
    %874 = vrot.lane.b32.xlu0 %v163, 48
    %v875 = vpop.permute.xlu0 %874
    %v877 = vsel %vm167, %v825, 0
    %v880 = vsel %vm292, %v875, 0
    %882 = vmatprep.subr.bf16.mxu0 0
    %883 = vmatpush1.bf16.msra.mxu0 %v880
    %884 = vmatprep.subr.bf16.mxu0 0
    %885 = vmatpush1.bf16.msra.mxu0 0
    %886 = vmatprep.subr.bf16.mxu0 0
    %887 = vmatpush1.bf16.msra.mxu0 0
    %888 = vmatprep.subr.bf16.mxu0 0
    %889 = vmatpush1.bf16.msra.mxu0 0
    %890 = vmatprep.subr.bf16.mxu0 0
    %891 = vmatpush1.bf16.msra.mxu0 0
    %892 = vmatprep.subr.bf16.mxu0 0
    %893 = vmatpush1.bf16.msra.mxu0 0
    %894 = vmatprep.subr.bf16.mxu0 0
    %895 = vmatpush1.bf16.msra.mxu0 0
    %896 = vmatprep.subr.bf16.mxu0 0
    %897 = vmatpush1.bf16.msra.mxu0 0
    %898 = vmatprep.subr.bf16.mxu0 0
    %899 = vmatpush1.bf16.msra.mxu0 0
    %900 = vmatprep.subr.bf16.mxu0 0
    %901 = vmatpush1.bf16.msra.mxu0 0
    %902 = vmatprep.subr.bf16.mxu0 0
    %903 = vmatpush1.bf16.msra.mxu0 0
    %904 = vmatprep.subr.bf16.mxu0 0
    %905 = vmatpush1.bf16.msra.mxu0 0
    %906 = vmatprep.subr.bf16.mxu0 0
    %907 = vmatpush1.bf16.msra.mxu0 0
    %908 = vmatprep.subr.bf16.mxu0 0
    %909 = vmatpush1.bf16.msra.mxu0 0
    %910 = vmatprep.subr.bf16.mxu0 0
    %911 = vmatpush1.bf16.msra.mxu0 0
    %912 = vmatprep.subr.bf16.mxu0 0
    %913 = vmatpush1.bf16.msra.mxu0 0
    %914 = vmatprep.mubr.bf16.mxu0 0
    %915 = vmatmul.mubr.bf16.gmra.mrb[0].mxu0 %v877
    %v916 = vpop.f32.mrb[0].mxu0
    %v917 = vadd.f32 0.0, %v916
    %v918 = vpop.f32.mrb[0].mxu0
    %v919 = vpop.f32.mrb[0].mxu0
    %v920 = vpop.f32.mrb[0].mxu0
    %921 = vdwg.mxu0
    %v922 = vpack.c.bf16 %v917, %v869
    %v923 = vld [vmem:[%s5 + $0x8] sm:$0xf]
    %v925 = vsel %vm167, %v922, 0
    %v928 = vsel %vm292, %v923, 0
    %930 = vmatprep.subr.bf16.mxu0 0
    %931 = vmatpush1.bf16.msra.mxu0 %v928
    %932 = vmatprep.subr.bf16.mxu0 0
    %933 = vmatpush1.bf16.msra.mxu0 0
    %934 = vmatprep.subr.bf16.mxu0 0
    %935 = vmatpush1.bf16.msra.mxu0 0
    %936 = vmatprep.subr.bf16.mxu0 0
    %937 = vmatpush1.bf16.msra.mxu0 0
    %938 = vmatprep.subr.bf16.mxu0 0
    %939 = vmatpush1.bf16.msra.mxu0 0
    %940 = vmatprep.subr.bf16.mxu0 0
    %941 = vmatpush1.bf16.msra.mxu0 0
    %942 = vmatprep.subr.bf16.mxu0 0
    %943 = vmatpush1.bf16.msra.mxu0 0
    %944 = vmatprep.subr.bf16.mxu0 0
    %945 = vmatpush1.bf16.msra.mxu0 0
    %946 = vmatprep.subr.bf16.mxu0 0
    %947 = vmatpush1.bf16.msra.mxu0 0
    %948 = vmatprep.subr.bf16.mxu0 0
    %949 = vmatpush1.bf16.msra.mxu0 0
    %950 = vmatprep.subr.bf16.mxu0 0
    %951 = vmatpush1.bf16.msra.mxu0 0
    %952 = vmatprep.subr.bf16.mxu0 0
    %953 = vmatpush1.bf16.msra.mxu0 0
    %954 = vmatprep.subr.bf16.mxu0 0
    %955 = vmatpush1.bf16.msra.mxu0 0
    %956 = vmatprep.subr.bf16.mxu0 0
    %957 = vmatpush1.bf16.msra.mxu0 0
    %958 = vmatprep.subr.bf16.mxu0 0
    %959 = vmatpush1.bf16.msra.mxu0 0
    %960 = vmatprep.subr.bf16.mxu0 0
    %961 = vmatpush1.bf16.msra.mxu0 0
    %962 = vmatprep.mubr.bf16.mxu0 0
    %963 = vmatmul.mubr.bf16.gmra.mrb[0].mxu0 %v925
    %v964 = vpop.f32.mrb[0].mxu0
    %v965 = vadd.f32 0.0, %v964
    %v966 = vpop.f32.mrb[0].mxu0
    %v967 = vpop.f32.mrb[0].mxu0
    %v968 = vadd.f32 0.0, %v967
    %v969 = vpop.f32.mrb[0].mxu0
    %970 = vdwg.mxu0
    %v971 = vadd.f32 %v696, %v965
    %v972 = vadd.f32 %v699, %v968
    %973 = vrot.lane.b32.xlu0 %v162, 104
    %v974 = vpop.permute.xlu0 %973
    %975 = vrot.lane.b32.xlu0 %v162, 72
    %v976 = vpop.permute.xlu0 %975
    %v978 = vsel %vm167, %v974, 0
    %v981 = vsel %vm167, %v976, 0
    %983 = vmatprep.subr.bf16.mxu0 0
    %984 = vmatpush1.bf16.xpose.msra.mxu0 %v981
    %985 = vmatprep.subr.bf16.mxu0 0
    %986 = vmatpush1.bf16.xpose.msra.mxu0 0
    %987 = vmatprep.subr.bf16.mxu0 0
    %988 = vmatpush1.bf16.xpose.msra.mxu0 0
    %989 = vmatprep.subr.bf16.mxu0 0
    %990 = vmatpush1.bf16.xpose.msra.mxu0 0
    %991 = vmatprep.subr.bf16.mxu0 0
    %992 = vmatpush1.bf16.xpose.msra.mxu0 0
    %993 = vmatprep.subr.bf16.mxu0 0
    %994 = vmatpush1.bf16.xpose.msra.mxu0 0
    %995 = vmatprep.subr.bf16.mxu0 0
    %996 = vmatpush1.bf16.xpose.msra.mxu0 0
    %997 = vmatprep.subr.bf16.mxu0 0
    %998 = vmatpush1.bf16.xpose.msra.mxu0 0
    %999 = vmatprep.subr.bf16.mxu0 0
    %1000 = vmatpush1.bf16.xpose.msra.mxu0 0
    %1001 = vmatprep.subr.bf16.mxu0 0
    %1002 = vmatpush1.bf16.xpose.msra.mxu0 0
    %1003 = vmatprep.subr.bf16.mxu0 0
    %1004 = vmatpush1.bf16.xpose.msra.mxu0 0
    %1005 = vmatprep.subr.bf16.mxu0 0
    %1006 = vmatpush1.bf16.xpose.msra.mxu0 0
    %1007 = vmatprep.subr.bf16.mxu0 0
    %1008 = vmatpush1.bf16.xpose.msra.mxu0 0
    %1009 = vmatprep.subr.bf16.mxu0 0
    %1010 = vmatpush1.bf16.xpose.msra.mxu0 0
    %1011 = vmatprep.subr.bf16.mxu0 0
    %1012 = vmatpush1.bf16.xpose.msra.mxu0 0
    %1013 = vmatprep.subr.bf16.mxu0 0
    %1014 = vmatpush1.bf16.xpose.msra.mxu0 0
    %1015 = vmatprep.mubr.bf16.mxu0 0
    %1016 = vmatmul.mubr.bf16.gmra.mrb[0].mxu0 %v978
    %v1017 = vpop.f32.mrb[0].mxu0
    %v1018 = vadd.f32 0.0, %v1017
    %v1019 = vpop.f32.mrb[0].mxu0
    %v1020 = vpop.f32.mrb[0].mxu0
    %v1021 = vpop.f32.mrb[0].mxu0
    %1022 = vdwg.mxu0
    %1023 = vrot.lane.b32.xlu0 %v163, 104
    %v1024 = vpop.permute.xlu0 %1023
    %1025 = vrot.lane.b32.xlu0 %v163, 72
    %v1026 = vpop.permute.xlu0 %1025
    %v1028 = vsel %vm167, %v1024, 0
    %v1031 = vsel %vm167, %v1026, 0
    %1033 = vmatprep.subr.bf16.mxu0 0
    %1034 = vmatpush1.bf16.xpose.msra.mxu0 %v1031
    %1035 = vmatprep.subr.bf16.mxu0 0
    %1036 = vmatpush1.bf16.xpose.msra.mxu0 0
    %1037 = vmatprep.subr.bf16.mxu0 0
    %1038 = vmatpush1.bf16.xpose.msra.mxu0 0
    %1039 = vmatprep.subr.bf16.mxu0 0
    %1040 = vmatpush1.bf16.xpose.msra.mxu0 0
    %1041 = vmatprep.subr.bf16.mxu0 0
    %1042 = vmatpush1.bf16.xpose.msra.mxu0 0
    %1043 = vmatprep.subr.bf16.mxu0 0
    %1044 = vmatpush1.bf16.xpose.msra.mxu0 0
    %1045 = vmatprep.subr.bf16.mxu0 0
    %1046 = vmatpush1.bf16.xpose.msra.mxu0 0
    %1047 = vmatprep.subr.bf16.mxu0 0
    %1048 = vmatpush1.bf16.xpose.msra.mxu0 0
    %1049 = vmatprep.subr.bf16.mxu0 0
    %1050 = vmatpush1.bf16.xpose.msra.mxu0 0
    %1051 = vmatprep.subr.bf16.mxu0 0
    %1052 = vmatpush1.bf16.xpose.msra.mxu0 0
    %1053 = vmatprep.subr.bf16.mxu0 0
    %1054 = vmatpush1.bf16.xpose.msra.mxu0 0
    %1055 = vmatprep.subr.bf16.mxu0 0
    %1056 = vmatpush1.bf16.xpose.msra.mxu0 0
    %1057 = vmatprep.subr.bf16.mxu0 0
    %1058 = vmatpush1.bf16.xpose.msra.mxu0 0
    %1059 = vmatprep.subr.bf16.mxu0 0
    %1060 = vmatpush1.bf16.xpose.msra.mxu0 0
    %1061 = vmatprep.subr.bf16.mxu0 0
    %1062 = vmatpush1.bf16.xpose.msra.mxu0 0
    %1063 = vmatprep.subr.bf16.mxu0 0
    %1064 = vmatpush1.bf16.xpose.msra.mxu0 0
    %1065 = vmatprep.mubr.bf16.mxu0 0
    %1066 = vmatmul.mubr.bf16.gmra.mrb[0].mxu0 %v1028
    %v1067 = vpop.f32.mrb[0].mxu0
    %v1068 = vadd.f32 0.0, %v1067
    %v1069 = vpop.f32.mrb[0].mxu0
    %v1070 = vpop.f32.mrb[0].mxu0
    %v1071 = vpop.f32.mrb[0].mxu0
    %1072 = vdwg.mxu0
    %v1073 = vsel %vm167, %v1018, -inf
    %1074 = vmax.xlane.f32.xlu0 %v1073
    %v1075 = vpop.xlane.xlu0 %1074
    %v1076 = vsel %vm167, %v1068, -inf
    %1077 = vmax.xlane.f32.xlu0 %v1076
    %v1078 = vpop.xlane.xlu0 %1077
    %v1079 = vsub.f32 %v1018, %v1075
    %v1080 = vsub.f32 %v1068, %v1078
    %v1081 = vmul.f32 %v1079, 1.442695
    %v1082 = vpow.pop %v1081
    %v1083 = vmul.f32 %v1080, 1.442695
    %v1084 = vpow.pop %v1083
    %v1085 = vsel %vm167, %v1082, 0.0
    %1086 = vadd.xlane.f32.xlu0 %v1085
    %v1087 = vpop.xlane.xlu0 %1086
    %v1088 = vsel %vm167, %v1084, 0.0
    %1089 = vadd.xlane.f32.xlu0 %v1088
    %v1090 = vpop.xlane.xlu0 %1089
    %v1091 = vrcp.pop %v1087
    %v1092 = vrcp.pop %v1090
    %v1093 = vmul.f32 %v1082, %v1091
    %v1094 = vmul.f32 %v1084, %v1092
    %v1095 = vpack.c.bf16 %v1093, %v1093
    %v1096 = vpack.c.bf16 %v1094, %v1094
    %1097 = vrot.lane.b32.xlu0 %v162, 40
    %v1098 = vpop.permute.xlu0 %1097
    %v1100 = vsel %vm167, %v1095, 0
    %v1103 = vsel %vm292, %v1098, 0
    %1105 = vmatprep.subr.bf16.mxu0 0
    %1106 = vmatpush1.bf16.msra.mxu0 %v1103
    %1107 = vmatprep.subr.bf16.mxu0 0
    %1108 = vmatpush1.bf16.msra.mxu0 0
    %1109 = vmatprep.subr.bf16.mxu0 0
    %1110 = vmatpush1.bf16.msra.mxu0 0
    %1111 = vmatprep.subr.bf16.mxu0 0
    %1112 = vmatpush1.bf16.msra.mxu0 0
    %1113 = vmatprep.subr.bf16.mxu0 0
    %1114 = vmatpush1.bf16.msra.mxu0 0
    %1115 = vmatprep.subr.bf16.mxu0 0
    %1116 = vmatpush1.bf16.msra.mxu0 0
    %1117 = vmatprep.subr.bf16.mxu0 0
    %1118 = vmatpush1.bf16.msra.mxu0 0
    %1119 = vmatprep.subr.bf16.mxu0 0
    %1120 = vmatpush1.bf16.msra.mxu0 0
    %1121 = vmatprep.subr.bf16.mxu0 0
    %1122 = vmatpush1.bf16.msra.mxu0 0
    %1123 = vmatprep.subr.bf16.mxu0 0
    %1124 = vmatpush1.bf16.msra.mxu0 0
    %1125 = vmatprep.subr.bf16.mxu0 0
    %1126 = vmatpush1.bf16.msra.mxu0 0
    %1127 = vmatprep.subr.bf16.mxu0 0
    %1128 = vmatpush1.bf16.msra.mxu0 0
    %1129 = vmatprep.subr.bf16.mxu0 0
    %1130 = vmatpush1.bf16.msra.mxu0 0
    %1131 = vmatprep.subr.bf16.mxu0 0
    %1132 = vmatpush1.bf16.msra.mxu0 0
    %1133 = vmatprep.subr.bf16.mxu0 0
    %1134 = vmatpush1.bf16.msra.mxu0 0
    %1135 = vmatprep.subr.bf16.mxu0 0
    %1136 = vmatpush1.bf16.msra.mxu0 0
    %1137 = vmatprep.mubr.bf16.mxu0 0
    %1138 = vmatmul.mubr.bf16.gmra.mrb[0].mxu0 %v1100
    %v1139 = vpop.f32.mrb[0].mxu0
    %v1140 = vadd.f32 0.0, %v1139
    %v1141 = vpop.f32.mrb[0].mxu0
    %v1142 = vpop.f32.mrb[0].mxu0
    %v1143 = vpop.f32.mrb[0].mxu0
    %1144 = vdwg.mxu0
    %1145 = vrot.lane.b32.xlu0 %v163, 40
    %v1146 = vpop.permute.xlu0 %1145
    %v1148 = vsel %vm167, %v1096, 0
    %v1151 = vsel %vm292, %v1146, 0
    %1153 = vmatprep.subr.bf16.mxu0 0
    %1154 = vmatpush1.bf16.msra.mxu0 %v1151
    %1155 = vmatprep.subr.bf16.mxu0 0
    %1156 = vmatpush1.bf16.msra.mxu0 0
    %1157 = vmatprep.subr.bf16.mxu0 0
    %1158 = vmatpush1.bf16.msra.mxu0 0
    %1159 = vmatprep.subr.bf16.mxu0 0
    %1160 = vmatpush1.bf16.msra.mxu0 0
    %1161 = vmatprep.subr.bf16.mxu0 0
    %1162 = vmatpush1.bf16.msra.mxu0 0
    %1163 = vmatprep.subr.bf16.mxu0 0
    %1164 = vmatpush1.bf16.msra.mxu0 0
    %1165 = vmatprep.subr.bf16.mxu0 0
    %1166 = vmatpush1.bf16.msra.mxu0 0
    %1167 = vmatprep.subr.bf16.mxu0 0
    %1168 = vmatpush1.bf16.msra.mxu0 0
    %1169 = vmatprep.subr.bf16.mxu0 0
    %1170 = vmatpush1.bf16.msra.mxu0 0
    %1171 = vmatprep.subr.bf16.mxu0 0
    %1172 = vmatpush1.bf16.msra.mxu0 0
    %1173 = vmatprep.subr.bf16.mxu0 0
    %1174 = vmatpush1.bf16.msra.mxu0 0
    %1175 = vmatprep.subr.bf16.mxu0 0
    %1176 = vmatpush1.bf16.msra.mxu0 0
    %1177 = vmatprep.subr.bf16.mxu0 0
    %1178 = vmatpush1.bf16.msra.mxu0 0
    %1179 = vmatprep.subr.bf16.mxu0 0
    %1180 = vmatpush1.bf16.msra.mxu0 0
    %1181 = vmatprep.subr.bf16.mxu0 0
    %1182 = vmatpush1.bf16.msra.mxu0 0
    %1183 = vmatprep.subr.bf16.mxu0 0
    %1184 = vmatpush1.bf16.msra.mxu0 0
    %1185 = vmatprep.mubr.bf16.mxu0 0
    %1186 = vmatmul.mubr.bf16.gmra.mrb[0].mxu0 %v1148
    %v1187 = vpop.f32.mrb[0].mxu0
    %v1188 = vadd.f32 0.0, %v1187
    %v1189 = vpop.f32.mrb[0].mxu0
    %v1190 = vpop.f32.mrb[0].mxu0
    %v1191 = vpop.f32.mrb[0].mxu0
    %1192 = vdwg.mxu0
    %v1193 = vpack.c.bf16 %v1188, %v1140
    %v1194 = vld [vmem:[%s5 + $0xc] sm:$0xf]
    %v1196 = vsel %vm167, %v1193, 0
    %v1199 = vsel %vm292, %v1194, 0
    %1201 = vmatprep.subr.bf16.mxu0 0
    %1202 = vmatpush1.bf16.msra.mxu0 %v1199
    %1203 = vmatprep.subr.bf16.mxu0 0
    %1204 = vmatpush1.bf16.msra.mxu0 0
    %1205 = vmatprep.subr.bf16.mxu0 0
    %1206 = vmatpush1.bf16.msra.mxu0 0
    %1207 = vmatprep.subr.bf16.mxu0 0
    %1208 = vmatpush1.bf16.msra.mxu0 0
    %1209 = vmatprep.subr.bf16.mxu0 0
    %1210 = vmatpush1.bf16.msra.mxu0 0
    %1211 = vmatprep.subr.bf16.mxu0 0
    %1212 = vmatpush1.bf16.msra.mxu0 0
    %1213 = vmatprep.subr.bf16.mxu0 0
    %1214 = vmatpush1.bf16.msra.mxu0 0
    %1215 = vmatprep.subr.bf16.mxu0 0
    %1216 = vmatpush1.bf16.msra.mxu0 0
    %1217 = vmatprep.subr.bf16.mxu0 0
    %1218 = vmatpush1.bf16.msra.mxu0 0
    %1219 = vmatprep.subr.bf16.mxu0 0
    %1220 = vmatpush1.bf16.msra.mxu0 0
    %1221 = vmatprep.subr.bf16.mxu0 0
    %1222 = vmatpush1.bf16.msra.mxu0 0
    %1223 = vmatprep.subr.bf16.mxu0 0
    %1224 = vmatpush1.bf16.msra.mxu0 0
    %1225 = vmatprep.subr.bf16.mxu0 0
    %1226 = vmatpush1.bf16.msra.mxu0 0
    %1227 = vmatprep.subr.bf16.mxu0 0
    %1228 = vmatpush1.bf16.msra.mxu0 0
    %1229 = vmatprep.subr.bf16.mxu0 0
    %1230 = vmatpush1.bf16.msra.mxu0 0
    %1231 = vmatprep.subr.bf16.mxu0 0
    %1232 = vmatpush1.bf16.msra.mxu0 0
    %1233 = vmatprep.mubr.bf16.mxu0 0
    %1234 = vmatmul.mubr.bf16.gmra.mrb[0].mxu0 %v1196
    %v1235 = vpop.f32.mrb[0].mxu0
    %v1236 = vadd.f32 0.0, %v1235
    %v1237 = vpop.f32.mrb[0].mxu0
    %v1238 = vpop.f32.mrb[0].mxu0
    %v1239 = vadd.f32 0.0, %v1238
    %v1240 = vpop.f32.mrb[0].mxu0
    %1241 = vdwg.mxu0
    %v1242 = vadd.f32 %v971, %v1236
    %v1243 = vadd.f32 %v972, %v1239
    %v1244 = vld [vmem:[%s6] sm:$0x1]
    %v1246 = vlaneseq
    %v1247 = vshrl.u32 %v1246, 7
    %v1248 = vsub.s32 0, %v1247
    %v1249 = vrot.slane %v1244, %v1248
    %v1251 = vadd.f32 %v1242, %v1249
    %v1252 = vadd.f32 %v1243, %v1249
    %v1253 = vadd.f32 %v46, %v1251
    %v1254 = vadd.f32 %v47, %v1252
    %v1255 = vld [vmem:[%s7] sm:$0x1]
    %v1256 = vld [vmem:[%s8] sm:$0x1]
    %v1257 = vsel %vm50, %v1253, 0.0
    %1258 = vadd.xlane.f32.xlu0 %v1257
    %v1259 = vpop.xlane.xlu0 %1258
    %v1260 = vsel %vm50, %v1254, 0.0
    %1261 = vadd.xlane.f32.xlu0 %v1260
    %v1262 = vpop.xlane.xlu0 %1261
    %v1263 = vmul.f32 %v1259, %v57
    %v1264 = vmul.f32 %v1262, %v57
    %v1265 = vsub.f32 %v1253, %v1263
    %v1266 = vsub.f32 %v1254, %v1264
    %v1267 = vmul.f32 %v1265, %v1265
    %v1268 = vmul.f32 %v1266, %v1266
    %v1269 = vsel %vm50, %v1267, 0.0
    %1270 = vadd.xlane.f32.xlu0 %v1269
    %v1271 = vpop.xlane.xlu0 %1270
    %v1272 = vsel %vm50, %v1268, 0.0
    %1273 = vadd.xlane.f32.xlu0 %v1272
    %v1274 = vpop.xlane.xlu0 %1273
    %v1275 = vmul.f32 %v1271, %v57
    %v1276 = vmul.f32 %v1274, %v57
    %v1277 = vadd.f32 %v1275, 1e-05
    %v1278 = vadd.f32 %v1276, 1e-05
    %v1279 = vrsqrt.pop %v1277
    %v1280 = vrsqrt.pop %v1278
    %v1281 = vmul.f32 %v1265, %v1279
    %v1282 = vmul.f32 %v1266, %v1280
    %v1284 = vlaneseq
    %v1285 = vshrl.u32 %v1284, 7
    %v1286 = vsub.s32 0, %v1285
    %v1287 = vrot.slane %v1255, %v1286
    %v1289 = vmul.f32 %v1281, %v1287
    %v1290 = vmul.f32 %v1282, %v1287
    %v1292 = vlaneseq
    %v1293 = vshrl.u32 %v1292, 7
    %v1294 = vsub.s32 0, %v1293
    %v1295 = vrot.slane %v1256, %v1294
    %v1297 = vadd.f32 %v1289, %v1295
    %v1298 = vadd.f32 %v1290, %v1295
    %v1299 = vpack.c.bf16 %v1298, %v1297
    %v1300 = vld [vmem:[%s9] sm:$0xf]
    %v1301 = vld [vmem:[%s9 + $0x4] sm:$0xf]
    %v1302 = vld [vmem:[%s9 + $0x8] sm:$0xf]
    %v1303 = vld [vmem:[%s9 + $0xc] sm:$0xf]
    %v1304 = vld [vmem:[%s10] sm:$0x1]
    %v1306 = vlaneseq
    %v1307 = vshrl.u32 %v1306, 7
    %v1308 = vsub.s32 0, %v1307
    %v1309 = vrot.slane %v1304, %v1308
    %v1315 = vunpack.c.l.b16 %v1300
    %v1316 = vunpack.c.l.b16 %v1301
    %v1317 = vunpack.c.l.b16 %v1302
    %v1318 = vunpack.c.l.b16 %v1303
    %v1319 = vpack.c.b16 %v1316, %v1315
    %v1320 = vpack.c.b16 %v1318, %v1317
    %v1324 = vsel %vm50, %v1299, 0
    %1326 = vmatprep.subr.bf16.mxu0 0
    %1327 = vmatpush1.bf16.msra.mxu0 %v1319
    %1328 = vmatprep.subr.bf16.mxu0 0
    %1329 = vmatpush1.bf16.msra.mxu0 %v1320
    %1330 = vmatprep.subr.bf16.mxu0 0
    %1331 = vmatpush1.bf16.msra.mxu0 0
    %1332 = vmatprep.subr.bf16.mxu0 0
    %1333 = vmatpush1.bf16.msra.mxu0 0
    %1334 = vmatprep.subr.bf16.mxu0 0
    %1335 = vmatpush1.bf16.msra.mxu0 0
    %1336 = vmatprep.subr.bf16.mxu0 0
    %1337 = vmatpush1.bf16.msra.mxu0 0
    %1338 = vmatprep.subr.bf16.mxu0 0
    %1339 = vmatpush1.bf16.msra.mxu0 0
    %1340 = vmatprep.subr.bf16.mxu0 0
    %1341 = vmatpush1.bf16.msra.mxu0 0
    %1342 = vmatprep.subr.bf16.mxu0 0
    %1343 = vmatpush1.bf16.msra.mxu0 0
    %1344 = vmatprep.subr.bf16.mxu0 0
    %1345 = vmatpush1.bf16.msra.mxu0 0
    %1346 = vmatprep.subr.bf16.mxu0 0
    %1347 = vmatpush1.bf16.msra.mxu0 0
    %1348 = vmatprep.subr.bf16.mxu0 0
    %1349 = vmatpush1.bf16.msra.mxu0 0
    %1350 = vmatprep.subr.bf16.mxu0 0
    %1351 = vmatpush1.bf16.msra.mxu0 0
    %1352 = vmatprep.subr.bf16.mxu0 0
    %1353 = vmatpush1.bf16.msra.mxu0 0
    %1354 = vmatprep.subr.bf16.mxu0 0
    %1355 = vmatpush1.bf16.msra.mxu0 0
    %1356 = vmatprep.subr.bf16.mxu0 0
    %1357 = vmatpush1.bf16.msra.mxu0 0
    %1358 = vmatprep.mubr.bf16.mxu0 0
    %1359 = vmatmul.mubr.bf16.gmra.mrb[0].mxu0 %v1324
    %v1360 = vpop.f32.mrb[0].mxu0
    %v1361 = vadd.f32 %v1309, %v1360
    %v1362 = vpop.f32.mrb[0].mxu0
    %v1363 = vpop.f32.mrb[0].mxu0
    %v1364 = vadd.f32 %v1309, %v1363
    %v1365 = vpop.f32.mrb[0].mxu0
    %1366 = vdwg.mxu0
    %v1367 = vmul.f32 %v1361, -1.702
    %v1368 = vmul.f32 %v1364, -1.702
    %v1369 = vmul.f32 %v1367, 1.442695
    %v1370 = vpow.pop %v1369
    %v1371 = vmul.f32 %v1368, 1.442695
    %v1372 = vpow.pop %v1371
    %v1373 = vadd.f32 %v1370, 1.0
    %v1374 = vadd.f32 %v1372, 1.0
    %v1375 = vrcp.pop %v1373
    %v1376 = vmul.f32 1.0, %v1375
    %v1377 = vrcp.pop %v1374
    %v1378 = vmul.f32 1.0, %v1377
    %v1379 = vmul.f32 %v1361, %v1376
    %v1380 = vmul.f32 %v1364, %v1378
    %v1381 = vpack.c.bf16 %v1380, %v1379
    %v1382 = vld [vmem:[%s11] sm:$0xf]
    %v1383 = vld [vmem:[%s11 + $0x4] sm:$0xf]
    %v1384 = vld [vmem:[%s11 + $0x8] sm:$0xf]
    %v1385 = vld [vmem:[%s11 + $0xc] sm:$0xf]
    %v1386 = vld [vmem:[%s11 + $0x10] sm:$0xf]
    %v1387 = vld [vmem:[%s11 + $0x14] sm:$0xf]
    %v1388 = vld [vmem:[%s11 + $0x18] sm:$0xf]
    %v1389 = vld [vmem:[%s11 + $0x1c] sm:$0xf]
    %v1390 = vld [vmem:[%s11 + $0x20] sm:$0xf]
    %v1391 = vld [vmem:[%s11 + $0x24] sm:$0xf]
    %v1392 = vld [vmem:[%s11 + $0x28] sm:$0xf]
    %v1393 = vld [vmem:[%s11 + $0x2c] sm:$0xf]
    %v1394 = vld [vmem:[%s11 + $0x30] sm:$0xf]
    %v1395 = vld [vmem:[%s11 + $0x34] sm:$0xf]
    %v1396 = vld [vmem:[%s11 + $0x38] sm:$0xf]
    %v1397 = vld [vmem:[%s11 + $0x3c] sm:$0xf]
    %v1398 = vld [vmem:[%s12] sm:$0x1]
    %v1400 = vlaneseq
    %v1401 = vshrl.u32 %v1400, 7
    %v1402 = vsub.s32 0, %v1401
    %v1403 = vrot.slane %v1398, %v1402
    %v1421 = vunpack.c.l.b16 %v1382
    %v1422 = vunpack.c.l.b16 %v1383
    %v1423 = vunpack.c.l.b16 %v1384
    %v1424 = vunpack.c.l.b16 %v1385
    %v1425 = vunpack.c.l.b16 %v1386
    %v1426 = vunpack.c.l.b16 %v1387
    %v1427 = vunpack.c.l.b16 %v1388
    %v1428 = vunpack.c.l.b16 %v1389
    %v1429 = vunpack.c.l.b16 %v1390
    %v1430 = vunpack.c.l.b16 %v1391
    %v1431 = vunpack.c.l.b16 %v1392
    %v1432 = vunpack.c.l.b16 %v1393
    %v1433 = vunpack.c.l.b16 %v1394
    %v1434 = vunpack.c.l.b16 %v1395
    %v1435 = vunpack.c.l.b16 %v1396
    %v1436 = vunpack.c.l.b16 %v1397
    %v1437 = vpack.c.b16 %v1422, %v1421
    %v1438 = vpack.c.b16 %v1424, %v1423
    %v1439 = vpack.c.b16 %v1426, %v1425
    %v1440 = vpack.c.b16 %v1428, %v1427
    %v1441 = vpack.c.b16 %v1430, %v1429
    %v1442 = vpack.c.b16 %v1432, %v1431
    %v1443 = vpack.c.b16 %v1434, %v1433
    %v1444 = vpack.c.b16 %v1436, %v1435
    %1453 = vmatprep.subr.bf16.mxu0 0
    %1454 = vmatpush1.bf16.msra.mxu0 %v1437
    %1455 = vmatprep.subr.bf16.mxu0 0
    %1456 = vmatpush1.bf16.msra.mxu0 %v1438
    %1457 = vmatprep.subr.bf16.mxu0 0
    %1458 = vmatpush1.bf16.msra.mxu0 %v1439
    %1459 = vmatprep.subr.bf16.mxu0 0
    %1460 = vmatpush1.bf16.msra.mxu0 %v1440
    %1461 = vmatprep.subr.bf16.mxu0 0
    %1462 = vmatpush1.bf16.msra.mxu0 %v1441
    %1463 = vmatprep.subr.bf16.mxu0 0
    %1464 = vmatpush1.bf16.msra.mxu0 %v1442
    %1465 = vmatprep.subr.bf16.mxu0 0
    %1466 = vmatpush1.bf16.msra.mxu0 %v1443
    %1467 = vmatprep.subr.bf16.mxu0 0
    %1468 = vmatpush1.bf16.msra.mxu0 %v1444
    %1469 = vmatprep.subr.bf16.mxu0 0
    %1470 = vmatpush1.bf16.msra.mxu0 0
    %1471 = vmatprep.subr.bf16.mxu0 0
    %1472 = vmatpush1.bf16.msra.mxu0 0
    %1473 = vmatprep.subr.bf16.mxu0 0
    %1474 = vmatpush1.bf16.msra.mxu0 0
    %1475 = vmatprep.subr.bf16.mxu0 0
    %1476 = vmatpush1.bf16.msra.mxu0 0
    %1477 = vmatprep.subr.bf16.mxu0 0
    %1478 = vmatpush1.bf16.msra.mxu0 0
    %1479 = vmatprep.subr.bf16.mxu0 0
    %1480 = vmatpush1.bf16.msra.mxu0 0
    %1481 = vmatprep.subr.bf16.mxu0 0
    %1482 = vmatpush1.bf16.msra.mxu0 0
    %1483 = vmatprep.subr.bf16.mxu0 0
    %1484 = vmatpush1.bf16.msra.mxu0 0
    %1485 = vmatprep.mubr.bf16.mxu0 0
    %1486 = vmatmul.mubr.bf16.gmra.mrb[0].mxu0 %v1381
    %v1487 = vpop.f32.mrb[0].mxu0
    %v1488 = vadd.f32 %v1403, %v1487
    %v1489 = vpop.f32.mrb[0].mxu0
    %v1490 = vpop.f32.mrb[0].mxu0
    %v1491 = vadd.f32 %v1403, %v1490
    %v1492 = vpop.f32.mrb[0].mxu0
    %1493 = vdwg.mxu0
    %v1494 = vadd.f32 %v1253, %v1488
    %v1495 = vadd.f32 %v1254, %v1491
    %1496 = vst.msk [vmem:[#allocation2] sm:$0xff] %vm50, %v1494
    %1497 = vst.msk [vmem:[#allocation2 + $0x8] sm:$0xff] %vm50, %v1495
    // Predicated region
    $region54: #{tpu_custom_call.1} parent=1 // pred_check
      _
    $region55: #{tpu_custom_call.1} parent=1 // pred_check_branch
      %1499 = sbr.rel (0) target = $region57
    $region56: #{tpu_custom_call.1} parent=1 // pred_region
      %s1501 = ssub.s32 256, 256
      %1502 = vsyncadd [#allocation3], %s1501
      %s1503 = sshll.u32 [#allocation2], 4
      %s1504 = int_to_ptr.vmem [resolvable:$true] %s1503
      %1509 = dma.vmem_to_hbm [thread:$0]  %s1504, 256, %s13, [#allocation3], 128, 128, 8
    $region57: #{tpu_custom_call.1} parent=1 // pred_fallthru
      _
    // Predicated region
    $region58: #{tpu_custom_call.1} parent=1 // pred_check
      _
    $region59: #{tpu_custom_call.1} parent=1 // pred_check_branch
      %1511 = sbr.rel (0) target = $region61
    $region60: #{tpu_custom_call.1} parent=1 // pred_region
      %1512 = dma.done [#allocation3], 256
    $region61: #{tpu_custom_call.1} parent=1 // pred_fallthru
      _
    %1513 = vsyncpa [#allocation3], 1

</llo_original>
